<compile_context>
chip_gen: v7x
topology: tpu7x:2x2x1
jax: 0.10.0
libtpu: 0.0.40
codegen_flags: <defaults>
</compile_context>

<pallas_src>
import jax
import jax.numpy as jnp
from jax.experimental import pallas as pl
from jax.experimental.pallas import tpu as pltpu

L1 = 32            # hyperparameters['L1']
IN_DIM = 768
N_BUCKETS = 8
FUSED_N = L1 + 2   # [W1 | Wpsqt | ones]


def nnue_kernel(x_ref, wf_ref, b1_ref, wh_ref, bh_ref, o_ref):
    # Widen the compact x tile to bf16 on the VPU and feed the MXU bf16 x bf16
    # with f32 accumulation. 0/1 features are exact in bf16; no f32 tile copy.
    x = x_ref[...].astype(jnp.bfloat16)                               # (TB, 768)

    # Single fused MXU pass over x:
    #   y[:, :L1]   = x @ W1^T      (pre-activation hidden)
    #   y[:, L1]    = x @ Wpsqt^T   (psqt head)
    #   y[:, L1+1]  = x @ ones      (row sum -> bucket index)
    y = jnp.dot(x, wf_ref[...], preferred_element_type=jnp.float32)  # (TB, 34)

    h = jnp.clip(y[:, :L1] + b1_ref[...], 0.0, 1.0)                  # (TB, 32)
    psqt = y[:, L1:L1 + 1]                                           # (TB, 1)
    s = y[:, L1 + 1:L1 + 2]                                          # (TB, 1) exact int-valued

    # bucket_idx = floor((sum(x) - 1) / 4), clamped to the valid range
    # (matches take_along_axis clamping; also makes ragged-edge garbage rows
    # harmless — their outputs are never written back).
    bucket = jnp.floor((s - 1.0) * 0.25).astype(jnp.int32)           # (TB, 1)
    bucket = jnp.clip(bucket, 0, N_BUCKETS - 1)

    # 8 hidden heads stacked as one (L1, 8) matmul (tiny, f32).
    o8 = jnp.dot(h, wh_ref[...], preferred_element_type=jnp.float32) + bh_ref[...]  # (TB, 8)

    # Per-row gather of the bucket column via one-hot select + lane reduce.
    col = jax.lax.broadcasted_iota(jnp.int32, o8.shape, 1)           # (TB, 8)
    sel = jnp.sum(jnp.where(col == bucket, o8, 0.0), axis=-1, keepdims=True)  # (TB, 1)

    o_ref[...] = sel + psqt


def _round_up(v, m):
    return -(-v // m) * m


def nnue_forward(x, w1, b1, wh, bh, wp, *, tile_b=4096):
    """x:  (B, 768) binary features in a compact dtype (int8 preferred; bf16/f32 accepted).
    w1: (768, L1) = input_layer.weight^T, b1: (1, L1),
    wh: (L1, 8)   = stacked hidden-head weights, bh: (1, 8),
    wp: (768, 1)  = psqt_layer.weight^T.
    Returns (B, 1) f32."""
    B, in_dim = x.shape
    assert in_dim == IN_DIM

    b1 = jnp.asarray(b1, jnp.float32).reshape(1, L1)
    bh = jnp.asarray(bh, jnp.float32).reshape(1, N_BUCKETS)
    wh = jnp.asarray(wh, jnp.float32).reshape(L1, N_BUCKETS)

    # Fuse the three x-consuming products into one bf16 weight matrix
    # (weights are tiny and VMEM-resident; accumulation stays f32).
    wf = jnp.concatenate(
        [jnp.asarray(w1, jnp.float32).reshape(IN_DIM, L1),
         jnp.asarray(wp, jnp.float32).reshape(IN_DIM, 1),
         jnp.ones((IN_DIM, 1), jnp.float32)], axis=1).astype(jnp.bfloat16)  # (768, 34)

    # Tile the batch. Multiple of 32 covers int8 sublane packing (and bf16/f32).
    # No jnp.pad of x: the ragged last block is handled by Pallas edge masking.
    tile_b = max(32, min(int(tile_b), _round_up(B, 32)))
    tile_b = _round_up(tile_b, 32)
    if B >= 2048 and _round_up(B, tile_b) // tile_b < 2:
        # Keep >= 2 tiles for large batches so both v7x TensorCores get work.
        tile_b = _round_up(-(-B // 2), 32)
    num_tiles = pl.cdiv(B, tile_b)

    x_bytes = int(jnp.dtype(x.dtype).itemsize)
    flops = 2 * B * IN_DIM * FUSED_N + 2 * B * L1 * N_BUCKETS
    bytes_accessed = (B * IN_DIM * x_bytes                 # x stream (dominant)
                      + IN_DIM * FUSED_N * 2               # fused bf16 weights
                      + (L1 + 1) * N_BUCKETS * 4 + L1 * 4  # small weights/biases
                      + B * 4)                             # output

    # Explicit scoped-VMEM budget: x double-buffered + in-kernel bf16 widen +
    # lane-padded output block + slack. Raises v5e's 16 MiB default when needed.
    vmem_est = (2 * tile_b * IN_DIM * x_bytes
                + tile_b * IN_DIM * 2
                + 2 * tile_b * 128 * 4
                + 4 * 1024 * 1024)
    vmem_limit = max(32 * 1024 * 1024, vmem_est)

    out = pl.pallas_call(
        nnue_kernel,
        out_shape=jax.ShapeDtypeStruct((B, 1), jnp.float32),
        grid=(num_tiles,),
        in_specs=[
            pl.BlockSpec((tile_b, IN_DIM), lambda i: (i, 0)),        # x: streamed / pipelined
            pl.BlockSpec((IN_DIM, FUSED_N), lambda i: (0, 0)),       # fused bf16 weights: resident
            pl.BlockSpec((1, L1), lambda i: (0, 0)),                 # b1: resident
            pl.BlockSpec((L1, N_BUCKETS), lambda i: (0, 0)),         # wh: resident
            pl.BlockSpec((1, N_BUCKETS), lambda i: (0, 0)),          # bh: resident
        ],
        out_specs=pl.BlockSpec((tile_b, 1), lambda i: (i, 0)),
        compiler_params=pltpu.CompilerParams(
            dimension_semantics=("parallel",),                       # megacore on v7x
            vmem_limit_bytes=int(vmem_limit)),
        cost_estimate=pl.CostEstimate(
            flops=flops, transcendentals=0, bytes_accessed=bytes_accessed),
    )(x, wf, b1, wh, bh)

    return out


def reference_forward(x, w1, b1, wh, bh, wp):
    bucket = jnp.floor((jnp.sum(x, -1, keepdims=True) - 1.0) / 4.0).astype(jnp.int32)
    h = jnp.clip(x @ w1 + b1, 0.0, 1.0)
    o8 = h @ wh + bh
    sel = jnp.take_along_axis(o8, bucket, axis=-1)
    return sel + x @ wp


if __name__ == "__main__":
    key = jax.random.PRNGKey(0)
    k_x, k_w1, k_b1, k_wh, k_bh, k_wp = jax.random.split(key, 6)

    B = 256
    TILE_B = 128   # small demo tile; production default is 4096

    # Deterministic binary inputs whose row-sums land in [1, 32]
    # (so bucket_idx is in [0, 8), matching the valid gather range).
    # Shipped as int8 straight into the kernel: no wrapper-side cast/pad passes.
    counts = jax.random.randint(k_x, (B,), 1, 33)                    # 1..32 pieces
    perm = jax.random.permutation(jax.random.fold_in(k_x, 1), IN_DIM)
    base = jnp.arange(IN_DIM)[None, :] < counts[:, None]
    x_i8 = base[:, perm].astype(jnp.int8)                            # (B, 768) int8

    # Deterministic parameter init (uniform, ~torch Linear scale).
    bnd1 = 1.0 / jnp.sqrt(IN_DIM)
    bndh = 1.0 / jnp.sqrt(L1)
    w1 = jax.random.uniform(k_w1, (IN_DIM, L1), jnp.float32, -bnd1, bnd1)     # input_layer.weight^T
    b1 = jax.random.uniform(k_b1, (1, L1), jnp.float32, -bnd1, bnd1)          # input_layer.bias
    wh = jax.random.uniform(k_wh, (L1, N_BUCKETS), jnp.float32, -bndh, bndh)  # 8 hidden heads stacked
    bh = jax.random.uniform(k_bh, (1, N_BUCKETS), jnp.float32, -bndh, bndh)
    wp = jax.random.uniform(k_wp, (IN_DIM, 1), jnp.float32, -bnd1, bnd1)      # psqt_layer.weight^T

    out = jax.block_until_ready(nnue_forward(x_i8, w1, b1, wh, bh, wp, tile_b=TILE_B))

    # Tight check: reference with the same bf16-rounded weights (kernel accumulates in f32,
    # x is 0/1 so every product is exact) — isolates kernel logic from weight rounding.
    x_f32 = x_i8.astype(jnp.float32)
    w1_b = w1.astype(jnp.bfloat16).astype(jnp.float32)
    wp_b = wp.astype(jnp.bfloat16).astype(jnp.float32)
    ref_bf16w = reference_forward(x_f32, w1_b, b1, wh, bh, wp_b)
    # Loose check: full f32 reference (bf16 weight rounding ~1e-3 relative).
    ref_f32 = reference_forward(x_f32, w1, b1, wh, bh, wp)

    assert out.shape == (B, 1), out.shape
    assert jnp.allclose(out, ref_bf16w, atol=1e-4, rtol=1e-4), \
        float(jnp.max(jnp.abs(out - ref_bf16w)))
    assert jnp.allclose(out, ref_f32, atol=5e-2, rtol=5e-2), \
        float(jnp.max(jnp.abs(out - ref_f32)))
    print("KERNEL_OK")
</pallas_src>

<mosaic_0001>
module attributes {stable_mosaic.version = 11 : i64} {
  func.func @nnue_kernel(%arg0: i32, %arg1: memref<128x768xi8, #tpu.memory_space<vmem>>, %arg2: memref<768x34xbf16, #tpu.memory_space<vmem>>, %arg3: memref<1x32xf32, #tpu.memory_space<vmem>>, %arg4: memref<32x8xf32, #tpu.memory_space<vmem>>, %arg5: memref<1x8xf32, #tpu.memory_space<vmem>>, %arg6: memref<128x1xf32, #tpu.memory_space<vmem>>) attributes {dimension_semantics = [#tpu.dimension_semantics<parallel>], iteration_bounds = array<i64: 2>, scalar_prefetch = 0 : i64, scratch_operands = 0 : i64, tpu.core_type = #tpu.core_type<tc>, window_params = [{transform_indices = @transform_0, window_bounds = array<i64: 128, 768>}, {pipeline_mode = #tpu.pipeline_mode<synchronous>, transform_indices = @transform_1, window_bounds = array<i64: 768, 34>}, {pipeline_mode = #tpu.pipeline_mode<synchronous>, transform_indices = @transform_2, window_bounds = array<i64: 1, 32>}, {pipeline_mode = #tpu.pipeline_mode<synchronous>, transform_indices = @transform_3, window_bounds = array<i64: 32, 8>}, {pipeline_mode = #tpu.pipeline_mode<synchronous>, transform_indices = @transform_4, window_bounds = array<i64: 1, 8>}, {transform_indices = @transform_5, window_bounds = array<i64: 128, 1>}]} {
    %c0 = arith.constant 0 : index
    %c0_0 = arith.constant 0 : index
    %0 = vector.load %arg1[%c0, %c0_0] : memref<128x768xi8, #tpu.memory_space<vmem>>, vector<128x768xi8>
    %1 = arith.sitofp %0 : vector<128x768xi8> to vector<128x768xbf16>
    %c0_1 = arith.constant 0 : index
    %c0_2 = arith.constant 0 : index
    %2 = vector.load %arg2[%c0_1, %c0_2] : memref<768x34xbf16, #tpu.memory_space<vmem>>, vector<768x34xbf16>
    %cst = arith.constant dense<0.000000e+00> : vector<128x34xf32>
    %3 = tpu.matmul %1, %2, %cst {dimension_numbers = #tpu.dot_dimension_numbers<[1], [0], [0], [1], [0, 0, 1, 1], [], []>} : vector<128x768xbf16>, vector<768x34xbf16>, vector<128x34xf32> -> vector<128x34xf32>
    %4 = vector.extract_strided_slice %3 {offsets = [0, 0], sizes = [128, 32], strides = [1, 1]} : vector<128x34xf32> to vector<128x32xf32>
    %c0_3 = arith.constant 0 : index
    %c0_4 = arith.constant 0 : index
    %5 = vector.load %arg3[%c0_3, %c0_4] : memref<1x32xf32, #tpu.memory_space<vmem>>, vector<1x32xf32>
    %6 = vector.broadcast %5 : vector<1x32xf32> to vector<128x32xf32>
    %7 = arith.addf %4, %6 : vector<128x32xf32>
    %cst_5 = arith.constant 0.000000e+00 : f32
    %cst_6 = arith.constant 1.000000e+00 : f32
    %8 = vector.broadcast %cst_5 : f32 to vector<128x32xf32>
    %9 = arith.maximumf %8, %7 : vector<128x32xf32>
    %10 = vector.broadcast %cst_6 : f32 to vector<128x32xf32>
    %11 = arith.minimumf %10, %9 : vector<128x32xf32>
    %12 = vector.extract_strided_slice %3 {offsets = [0, 32], sizes = [128, 1], strides = [1, 1]} : vector<128x34xf32> to vector<128x1xf32>
    %13 = vector.extract_strided_slice %3 {offsets = [0, 33], sizes = [128, 1], strides = [1, 1]} : vector<128x34xf32> to vector<128x1xf32>
    %cst_7 = arith.constant 1.000000e+00 : f32
    %14 = vector.broadcast %cst_7 : f32 to vector<128x1xf32>
    %15 = arith.subf %13, %14 : vector<128x1xf32>
    %cst_8 = arith.constant 2.500000e-01 : f32
    %16 = vector.broadcast %cst_8 : f32 to vector<128x1xf32>
    %17 = arith.mulf %15, %16 : vector<128x1xf32>
    %18 = math.floor %17 : vector<128x1xf32>
    %19 = arith.fptosi %18 : vector<128x1xf32> to vector<128x1xi32>
    %c0_i32 = arith.constant 0 : i32
    %c7_i32 = arith.constant 7 : i32
    %20 = vector.broadcast %c0_i32 : i32 to vector<128x1xi32>
    %21 = arith.maxsi %20, %19 : vector<128x1xi32>
    %22 = vector.broadcast %c7_i32 : i32 to vector<128x1xi32>
    %23 = arith.minsi %22, %21 : vector<128x1xi32>
    %c0_9 = arith.constant 0 : index
    %c0_10 = arith.constant 0 : index
    %24 = vector.load %arg4[%c0_9, %c0_10] : memref<32x8xf32, #tpu.memory_space<vmem>>, vector<32x8xf32>
    %cst_11 = arith.constant dense<0.000000e+00> : vector<128x8xf32>
    %25 = tpu.matmul %11, %24, %cst_11 {dimension_numbers = #tpu.dot_dimension_numbers<[1], [0], [0], [1], [0, 0, 1, 1], [], []>} : vector<128x32xf32>, vector<32x8xf32>, vector<128x8xf32> -> vector<128x8xf32>
    %c0_12 = arith.constant 0 : index
    %c0_13 = arith.constant 0 : index
    %26 = vector.load %arg5[%c0_12, %c0_13] : memref<1x8xf32, #tpu.memory_space<vmem>>, vector<1x8xf32>
    %27 = vector.broadcast %26 : vector<1x8xf32> to vector<128x8xf32>
    %28 = arith.addf %25, %27 : vector<128x8xf32>
    %29 = tpu.iota {dimensions = array<i32: 1>} : vector<128x8xi32>
    %30 = vector.broadcast %23 : vector<128x1xi32> to vector<128x8xi32>
    %31 = arith.cmpi eq, %29, %30 : vector<128x8xi32>
    %cst_14 = arith.constant 0.000000e+00 : f32
    %32 = vector.broadcast %cst_14 : f32 to vector<128x8xf32>
    %33 = arith.select %31, %28, %32 : vector<128x8xi1>, vector<128x8xf32>
    %cst_15 = arith.constant dense<0.000000e+00> : vector<128xf32>
    %34 = vector.multi_reduction <add>, %33, %cst_15 [1] : vector<128x8xf32> to vector<128xf32>
    %35 = vector.shape_cast %34 : vector<128xf32> to vector<128x1xf32>
    %36 = arith.addf %35, %12 : vector<128x1xf32>
    %c0_16 = arith.constant 0 : index
    %c0_17 = arith.constant 0 : index
    %37 = vector.load %arg6[%c0_16, %c0_17] : memref<128x1xf32, #tpu.memory_space<vmem>>, vector<128x1xf32>
    tpu.vector_store %arg6[%c0_16, %c0_17], %36 {strides = array<i32>} : memref<128x1xf32, #tpu.memory_space<vmem>>, vector<128x1xf32>,
    return
  }
  func.func @transform_0(%arg0: i32) -> (i32, i32) {
    %c0_i32 = arith.constant 0 : i32
    %c0_i32_0 = arith.constant 0 : i32
    return %arg0, %c0_i32 : i32, i32
  }
  func.func @transform_1(%arg0: i32) -> (i32, i32) {
    %c0_i32 = arith.constant 0 : i32
    %c0_i32_0 = arith.constant 0 : i32
    %c0_i32_1 = arith.constant 0 : i32
    return %c0_i32, %c0_i32_0 : i32, i32
  }
  func.func @transform_2(%arg0: i32) -> (i32, i32) {
    %c0_i32 = arith.constant 0 : i32
    %c0_i32_0 = arith.constant 0 : i32
    %c0_i32_1 = arith.constant 0 : i32
    return %c0_i32, %c0_i32_0 : i32, i32
  }
  func.func @transform_3(%arg0: i32) -> (i32, i32) {
    %c0_i32 = arith.constant 0 : i32
    %c0_i32_0 = arith.constant 0 : i32
    %c0_i32_1 = arith.constant 0 : i32
    return %c0_i32, %c0_i32_0 : i32, i32
  }
  func.func @transform_4(%arg0: i32) -> (i32, i32) {
    %c0_i32 = arith.constant 0 : i32
    %c0_i32_0 = arith.constant 0 : i32
    %c0_i32_1 = arith.constant 0 : i32
    return %c0_i32, %c0_i32_0 : i32, i32
  }
  func.func @transform_5(%arg0: i32) -> (i32, i32) {
    %c0_i32 = arith.constant 0 : i32
    %c0_i32_0 = arith.constant 0 : i32
    return %arg0, %c0_i32 : i32, i32
  }
}

</mosaic_0001>

<llo_original>
// kernel: tpu_custom_call.1
$region0: #{tpu_custom_call.1}
  #allocation0 [shape = 'u32[]', space=smem, size = 0x4, offset = 0x4, fixed_abs, tag = 'smem constant byte address 0x4 - core index']
  #allocation1 [shape = 'u32[144,128]{1,0:T(1,128)}', space=vmem, size = 0x12000, scoped, tag = 'internal scratch']
  %s0 = inlined_call_operand.vmem [shape: s8[256,768], index: 0, kind: input, shape index: {}]
  %s1 = inlined_call_operand.vmem [shape: bf16[768,34], index: 1, kind: input, shape index: {}]
  %s2 = inlined_call_operand.vmem [shape: f32[1,32], index: 2, kind: input, shape index: {}]
  %s3 = inlined_call_operand.vmem [shape: f32[32,8], index: 3, kind: input, shape index: {}]
  %s4 = inlined_call_operand.vmem [shape: f32[1,8], index: 4, kind: input, shape index: {}]
  %s5 = inlined_call_operand.vmem [shape: f32[256,1], index: 5, kind: output, shape index: {}]
  %s6 = sld [smem:[#allocation0]]
  $region53: #{tpu_custom_call.1} parent=0
    _
  %s8 = ssub.s32 1, %s6
  %s9 = scalar_select 0, %s8, %s6
  loop: start=0, step=1, limit=4
  $region2: #{tpu_custom_call.1} parent=0 // loop_pre_header
    _
  $region3: #{tpu_custom_call.1} parent=0 // loop_header
    %s11 = sphi 0, %s15
    %p12 = scmp.ge.s32.totalorder %s11, 4
    %s21 = sphi 0, %s23
    %s24 = sphi 0, %s21
    %s25 = sphi 0, %s24
    %s41 = sphi 0, %s25
    %s45 = sphi 0, %s45
    %s47 = sphi 0, %s45
    %s48 = sphi 0, %s47
    %s62 = sphi 0, %s48
    %s66 = sphi 0, %s66
    %s68 = sphi 0, %s66
    %s69 = sphi 0, %s68
    %s83 = sphi 0, %s69
    %s87 = sphi 0, %s87
    %s89 = sphi 0, %s87
    %s90 = sphi 0, %s89
    %s104 = sphi 0, %s90
    %s108 = sphi 0, %s108
    %s110 = sphi 0, %s108
    %s111 = sphi 0, %s110
    %s125 = sphi 0, %s111
    %s131 = sphi 0, %s133
    %s134 = sphi 0, %s131
    %s135 = sphi 0, %s134
    %s151 = sphi 0, %s135
  $region4: #{tpu_custom_call.1} parent=0 // loop_header_branch
    %14 = sbr.rel (%p12) target = $region8
  $region5: #{tpu_custom_call.1} parent=0 // loop_body
    %s16 = ssub.s32 %s11, 1
    %s17 = ssub.s32 %s11, 2
    %s18 = sadd.s32 %s11, 1
    %s19 = ssub.s32 %s11, %s18
    %p20 = scmp.eq.s32.totalorder %s19, 0
    %s22 = sadd.s32 %s21, 1
    %s23 = scalar_select %p20, %s21, %s22
    %p26 = pneg %p20
    %p27 = scmp.eq.s32.totalorder %s11, 1
    %p28 = por %p26, %p27
    %p29 = scmp.ne.s32.totalorder %s21, %s24
    %p30 = scmp.eq.s32.totalorder %s11, 0
    %p31 = por %p29, %p30
    %p32 = scmp.ne.s32.totalorder %s21, %s24
    %p33 = scmp.eq.s32.totalorder %s16, 1
    %p34 = por %p32, %p33
    %p35 = scmp.ne.s32.totalorder %s24, %s25
    %p36 = scmp.eq.s32.totalorder %s16, 0
    %p37 = por %p35, %p36
    %p38 = scmp.ne.s32.totalorder %s24, %s25
    %p39 = scmp.eq.s32.totalorder %s17, 1
    %p40 = por %p38, %p39
    %p42 = scmp.ne.s32.totalorder %s25, %s41
    %p43 = scmp.eq.s32.totalorder %s17, 0
    %p44 = por %p42, %p43
    %s46 = sadd.s32 %s45, 1
    %p49 = scmp.eq.s32.totalorder %s11, 1
    %p50 = scmp.ne.s32.totalorder %s45, %s47
    %p51 = scmp.eq.s32.totalorder %s11, 0
    %p52 = por %p50, %p51
    %p53 = scmp.ne.s32.totalorder %s45, %s47
    %p54 = scmp.eq.s32.totalorder %s16, 1
    %p55 = por %p53, %p54
    %p56 = scmp.ne.s32.totalorder %s47, %s48
    %p57 = scmp.eq.s32.totalorder %s16, 0
    %p58 = por %p56, %p57
    %p59 = scmp.ne.s32.totalorder %s47, %s48
    %p60 = scmp.eq.s32.totalorder %s17, 1
    %p61 = por %p59, %p60
    %p63 = scmp.ne.s32.totalorder %s48, %s62
    %p64 = scmp.eq.s32.totalorder %s17, 0
    %p65 = por %p63, %p64
    %s67 = sadd.s32 %s66, 1
    %p70 = scmp.eq.s32.totalorder %s11, 1
    %p71 = scmp.ne.s32.totalorder %s66, %s68
    %p72 = scmp.eq.s32.totalorder %s11, 0
    %p73 = por %p71, %p72
    %p74 = scmp.ne.s32.totalorder %s66, %s68
    %p75 = scmp.eq.s32.totalorder %s16, 1
    %p76 = por %p74, %p75
    %p77 = scmp.ne.s32.totalorder %s68, %s69
    %p78 = scmp.eq.s32.totalorder %s16, 0
    %p79 = por %p77, %p78
    %p80 = scmp.ne.s32.totalorder %s68, %s69
    %p81 = scmp.eq.s32.totalorder %s17, 1
    %p82 = por %p80, %p81
    %p84 = scmp.ne.s32.totalorder %s69, %s83
    %p85 = scmp.eq.s32.totalorder %s17, 0
    %p86 = por %p84, %p85
    %s88 = sadd.s32 %s87, 1
    %p91 = scmp.eq.s32.totalorder %s11, 1
    %p92 = scmp.ne.s32.totalorder %s87, %s89
    %p93 = scmp.eq.s32.totalorder %s11, 0
    %p94 = por %p92, %p93
    %p95 = scmp.ne.s32.totalorder %s87, %s89
    %p96 = scmp.eq.s32.totalorder %s16, 1
    %p97 = por %p95, %p96
    %p98 = scmp.ne.s32.totalorder %s89, %s90
    %p99 = scmp.eq.s32.totalorder %s16, 0
    %p100 = por %p98, %p99
    %p101 = scmp.ne.s32.totalorder %s89, %s90
    %p102 = scmp.eq.s32.totalorder %s17, 1
    %p103 = por %p101, %p102
    %p105 = scmp.ne.s32.totalorder %s90, %s104
    %p106 = scmp.eq.s32.totalorder %s17, 0
    %p107 = por %p105, %p106
    %s109 = sadd.s32 %s108, 1
    %p112 = scmp.eq.s32.totalorder %s11, 1
    %p113 = scmp.ne.s32.totalorder %s108, %s110
    %p114 = scmp.eq.s32.totalorder %s11, 0
    %p115 = por %p113, %p114
    %p116 = scmp.ne.s32.totalorder %s108, %s110
    %p117 = scmp.eq.s32.totalorder %s16, 1
    %p118 = por %p116, %p117
    %p119 = scmp.ne.s32.totalorder %s110, %s111
    %p120 = scmp.eq.s32.totalorder %s16, 0
    %p121 = por %p119, %p120
    %p122 = scmp.ne.s32.totalorder %s110, %s111
    %p123 = scmp.eq.s32.totalorder %s17, 1
    %p124 = por %p122, %p123
    %p126 = scmp.ne.s32.totalorder %s111, %s125
    %p127 = scmp.eq.s32.totalorder %s17, 0
    %p128 = por %p126, %p127
    %s129 = ssub.s32 %s11, %s18
    %p130 = scmp.eq.s32.totalorder %s129, 0
    %s132 = sadd.s32 %s131, 1
    %s133 = scalar_select %p130, %s131, %s132
    %p136 = pneg %p130
    %p137 = scmp.eq.s32.totalorder %s11, 1
    %p138 = por %p136, %p137
    %p139 = scmp.ne.s32.totalorder %s131, %s134
    %p140 = scmp.eq.s32.totalorder %s11, 0
    %p141 = por %p139, %p140
    %p142 = scmp.ne.s32.totalorder %s131, %s134
    %p143 = scmp.eq.s32.totalorder %s16, 1
    %p144 = por %p142, %p143
    %p145 = scmp.ne.s32.totalorder %s134, %s135
    %p146 = scmp.eq.s32.totalorder %s16, 0
    %p147 = por %p145, %p146
    %p148 = scmp.ne.s32.totalorder %s134, %s135
    %p149 = scmp.eq.s32.totalorder %s17, 1
    %p150 = por %p148, %p149
    %p152 = scmp.ne.s32.totalorder %s135, %s151
    %p153 = scmp.eq.s32.totalorder %s17, 0
    %p154 = por %p152, %p153
    %p155 = scmp.le.s32.totalorder 1, %s11
    %p156 = scmp.lt.s32.totalorder %s11, 3
    %p157 = pnand %p155, %p156
    %p158 = pneg %p157
    // Predicated region
    $region9: #{tpu_custom_call.1} parent=5 // pred_check
      _
    $region10: #{tpu_custom_call.1} parent=5 // pred_check_branch
      %160 = sbr.rel (%p157) target = $region12
    $region11: #{tpu_custom_call.1} parent=5 // pred_region
      %s161 = ssub.s32 %s11, 1
      // Predicated region
      $region13: #{tpu_custom_call.1} parent=11 // pred_check
        %p162 = pneg %p58
      $region14: #{tpu_custom_call.1} parent=11 // pred_check_branch
        %164 = sbr.rel (%p162) target = $region16
      $region15: #{tpu_custom_call.1} parent=11 // pred_region
        _
      $region16: #{tpu_custom_call.1} parent=11 // pred_fallthru
        _
      // Predicated region
      $region17: #{tpu_custom_call.1} parent=11 // pred_check
        %p165 = pneg %p79
      $region18: #{tpu_custom_call.1} parent=11 // pred_check_branch
        %167 = sbr.rel (%p165) target = $region20
      $region19: #{tpu_custom_call.1} parent=11 // pred_region
        _
      $region20: #{tpu_custom_call.1} parent=11 // pred_fallthru
        _
      // Predicated region
      $region21: #{tpu_custom_call.1} parent=11 // pred_check
        %p168 = pneg %p100
      $region22: #{tpu_custom_call.1} parent=11 // pred_check_branch
        %170 = sbr.rel (%p168) target = $region24
      $region23: #{tpu_custom_call.1} parent=11 // pred_region
        _
      $region24: #{tpu_custom_call.1} parent=11 // pred_fallthru
        _
      // Predicated region
      $region25: #{tpu_custom_call.1} parent=11 // pred_check
        %p171 = pneg %p121
      $region26: #{tpu_custom_call.1} parent=11 // pred_check_branch
        %173 = sbr.rel (%p171) target = $region28
      $region27: #{tpu_custom_call.1} parent=11 // pred_region
        _
      $region28: #{tpu_custom_call.1} parent=11 // pred_fallthru
        _
    $region12: #{tpu_custom_call.1} parent=5 // pred_fallthru
      _
    %p174 = scmp.lt.s32.totalorder %s11, 2
    // Predicated region
    $region29: #{tpu_custom_call.1} parent=5 // pred_check
      %p175 = pneg %p174
    $region30: #{tpu_custom_call.1} parent=5 // pred_check_branch
      %177 = sbr.rel (%p175) target = $region32
    $region31: #{tpu_custom_call.1} parent=5 // pred_region
      // Predicated region
      $region33: #{tpu_custom_call.1} parent=31 // pred_check
        %p178 = pneg %p31
      $region34: #{tpu_custom_call.1} parent=31 // pred_check_branch
        %180 = sbr.rel (%p178) target = $region36
      $region35: #{tpu_custom_call.1} parent=31 // pred_region
        %s181 = smul.u32 4, %s11
        %p182 = scmp.lt.s32.totalorder %s181, 7
        %s183 = scalar_select %p182, %s181, 7
        %s184 = smul.addr %s183, 6
        %s185 = smul.addr %s184, 8
        %s186 = scalar_lea.vmem %s0, %s185
        %s187 = smul.u32 4, %s11
      $region36: #{tpu_custom_call.1} parent=31 // pred_fallthru
        _
    $region32: #{tpu_custom_call.1} parent=5 // pred_fallthru
      _
    %p188 = scmp.le.s32.totalorder 1, %s11
    %p189 = scmp.lt.s32.totalorder %s11, 3
    %p190 = pnand %p188, %p189
    %p191 = pneg %p190
    // Predicated region
    $region37: #{tpu_custom_call.1} parent=5 // pred_check
      _
    $region38: #{tpu_custom_call.1} parent=5 // pred_check_branch
      %193 = sbr.rel (%p190) target = $region40
    $region39: #{tpu_custom_call.1} parent=5 // pred_region
      %s194 = ssub.s32 %s11, 1
      %s195 = smul.u32 4, %s16
      %p196 = scmp.lt.s32.totalorder %s195, 7
      %s197 = scalar_select %p196, %s195, 7
      %s198 = smul.addr %s197, 6
      %s199 = smul.addr %s198, 8
      %s200 = scalar_lea.vmem %s0, %s199
      %p201 = pneg %p37
      %p202 = pneg %p34
      %p203 = pneg %p58
      %p204 = pneg %p55
      %p205 = pneg %p79
      %p206 = pneg %p76
      %p207 = pneg %p100
      %p208 = pneg %p97
      %p209 = pneg %p121
      %p210 = pneg %p118
      %p211 = pneg %p147
      %p212 = pneg %p144
      %s213 = smul.u32 16, %s16
      %p214 = scmp.lt.s32.totalorder %s213, 31
      %s215 = scalar_select %p214, %s213, 31
      %s216 = smul.addr %s215, 8
      %s217 = scalar_lea.vmem %s5, %s216
      %s218 = smul.u32 4, %s16
      %p219 = scmp.lt.s32.totalorder %s218, 7
      %s220 = scalar_select %p219, %s218, 7
      %s221 = smul.addr %s220, 6
      %s222 = smul.addr %s221, 8
      %s223 = scalar_lea.vmem %s0, %s222
      %s224 = smul.u32 4, %s16
      %s225 = smul.u32 16, %s16
      %p226 = scmp.lt.s32.totalorder %s225, 31
      %s227 = scalar_select %p226, %s225, 31
      %s228 = smul.addr %s227, 8
      %s229 = scalar_lea.vmem %s5, %s228
      %s230 = smul.u32 16, %s16
      %v232 = vld [vmem:[%s223] sm:$0xff]
      %v233 = vld [vmem:[%s223 + $0x8] sm:$0xff]
      %v234 = vld [vmem:[%s223 + $0x10] sm:$0xff]
      %v235 = vld [vmem:[%s223 + $0x18] sm:$0xff]
      %v236 = vld [vmem:[%s223 + $0x20] sm:$0xff]
      %v237 = vld [vmem:[%s223 + $0x28] sm:$0xff]
      %v238 = vld [vmem:[%s223 + $0x30] sm:$0xff]
      %v239 = vld [vmem:[%s223 + $0x38] sm:$0xff]
      %v240 = vld [vmem:[%s223 + $0x40] sm:$0xff]
      %v241 = vld [vmem:[%s223 + $0x48] sm:$0xff]
      %v242 = vld [vmem:[%s223 + $0x50] sm:$0xff]
      %v243 = vld [vmem:[%s223 + $0x58] sm:$0xff]
      %v244 = vld [vmem:[%s223 + $0x60] sm:$0xff]
      %v245 = vld [vmem:[%s223 + $0x68] sm:$0xff]
      %v246 = vld [vmem:[%s223 + $0x70] sm:$0xff]
      %v247 = vld [vmem:[%s223 + $0x78] sm:$0xff]
      %v248 = vld [vmem:[%s223 + $0x80] sm:$0xff]
      %v249 = vld [vmem:[%s223 + $0x88] sm:$0xff]
      %v250 = vld [vmem:[%s223 + $0x90] sm:$0xff]
      %v251 = vld [vmem:[%s223 + $0x98] sm:$0xff]
      %v252 = vld [vmem:[%s223 + $0xa0] sm:$0xff]
      %v253 = vld [vmem:[%s223 + $0xa8] sm:$0xff]
      %v254 = vld [vmem:[%s223 + $0xb0] sm:$0xff]
      %v255 = vld [vmem:[%s223 + $0xb8] sm:$0xff]
      %v256 = vunpack.c.l.s8.bf16 %v232
      %v257 = vunpack.c.l.s8.bf16 %v233
      %v258 = vunpack.c.l.s8.bf16 %v234
      %v259 = vunpack.c.l.s8.bf16 %v235
      %v260 = vunpack.c.l.s8.bf16 %v236
      %v261 = vunpack.c.l.s8.bf16 %v237
      %v262 = vunpack.c.h.s8.bf16 %v232
      %v263 = vunpack.c.h.s8.bf16 %v233
      %v264 = vunpack.c.h.s8.bf16 %v234
      %v265 = vunpack.c.h.s8.bf16 %v235
      %v266 = vunpack.c.h.s8.bf16 %v236
      %v267 = vunpack.c.h.s8.bf16 %v237
      %v268 = vunpack.c.l.s8.bf16 %v238
      %v269 = vunpack.c.l.s8.bf16 %v239
      %v270 = vunpack.c.l.s8.bf16 %v240
      %v271 = vunpack.c.l.s8.bf16 %v241
      %v272 = vunpack.c.l.s8.bf16 %v242
      %v273 = vunpack.c.l.s8.bf16 %v243
      %v274 = vunpack.c.h.s8.bf16 %v238
      %v275 = vunpack.c.h.s8.bf16 %v239
      %v276 = vunpack.c.h.s8.bf16 %v240
      %v277 = vunpack.c.h.s8.bf16 %v241
      %v278 = vunpack.c.h.s8.bf16 %v242
      %v279 = vunpack.c.h.s8.bf16 %v243
      %v280 = vunpack.c.l.s8.bf16 %v244
      %v281 = vunpack.c.l.s8.bf16 %v245
      %v282 = vunpack.c.l.s8.bf16 %v246
      %v283 = vunpack.c.l.s8.bf16 %v247
      %v284 = vunpack.c.l.s8.bf16 %v248
      %v285 = vunpack.c.l.s8.bf16 %v249
      %v286 = vunpack.c.h.s8.bf16 %v244
      %v287 = vunpack.c.h.s8.bf16 %v245
      %v288 = vunpack.c.h.s8.bf16 %v246
      %v289 = vunpack.c.h.s8.bf16 %v247
      %v290 = vunpack.c.h.s8.bf16 %v248
      %v291 = vunpack.c.h.s8.bf16 %v249
      %v292 = vunpack.c.l.s8.bf16 %v250
      %v293 = vunpack.c.l.s8.bf16 %v251
      %v294 = vunpack.c.l.s8.bf16 %v252
      %v295 = vunpack.c.l.s8.bf16 %v253
      %v296 = vunpack.c.l.s8.bf16 %v254
      %v297 = vunpack.c.l.s8.bf16 %v255
      %v298 = vunpack.c.h.s8.bf16 %v250
      %v299 = vunpack.c.h.s8.bf16 %v251
      %v300 = vunpack.c.h.s8.bf16 %v252
      %v301 = vunpack.c.h.s8.bf16 %v253
      %v302 = vunpack.c.h.s8.bf16 %v254
      %v303 = vunpack.c.h.s8.bf16 %v255
      %v304 = vld [vmem:[%s1] sm:$0xf]
      %v305 = vld [vmem:[%s1 + $0x4] sm:$0xf]
      %v306 = vld [vmem:[%s1 + $0x8] sm:$0xf]
      %v307 = vld [vmem:[%s1 + $0xc] sm:$0xf]
      %v308 = vld [vmem:[%s1 + $0x10] sm:$0xf]
      %v309 = vld [vmem:[%s1 + $0x14] sm:$0xf]
      %v310 = vld [vmem:[%s1 + $0x18] sm:$0xf]
      %v311 = vld [vmem:[%s1 + $0x1c] sm:$0xf]
      %v312 = vld [vmem:[%s1 + $0x20] sm:$0xf]
      %v313 = vld [vmem:[%s1 + $0x24] sm:$0xf]
      %v314 = vld [vmem:[%s1 + $0x28] sm:$0xf]
      %v315 = vld [vmem:[%s1 + $0x2c] sm:$0xf]
      %v316 = vld [vmem:[%s1 + $0x30] sm:$0xf]
      %v317 = vld [vmem:[%s1 + $0x34] sm:$0xf]
      %v318 = vld [vmem:[%s1 + $0x38] sm:$0xf]
      %v319 = vld [vmem:[%s1 + $0x3c] sm:$0xf]
      %v320 = vld [vmem:[%s1 + $0x40] sm:$0xf]
      %v321 = vld [vmem:[%s1 + $0x44] sm:$0xf]
      %v322 = vld [vmem:[%s1 + $0x48] sm:$0xf]
      %v323 = vld [vmem:[%s1 + $0x4c] sm:$0xf]
      %v324 = vld [vmem:[%s1 + $0x50] sm:$0xf]
      %v325 = vld [vmem:[%s1 + $0x54] sm:$0xf]
      %v326 = vld [vmem:[%s1 + $0x58] sm:$0xf]
      %v327 = vld [vmem:[%s1 + $0x5c] sm:$0xf]
      %v328 = vld [vmem:[%s1 + $0x60] sm:$0xf]
      %v329 = vld [vmem:[%s1 + $0x64] sm:$0xf]
      %v330 = vld [vmem:[%s1 + $0x68] sm:$0xf]
      %v331 = vld [vmem:[%s1 + $0x6c] sm:$0xf]
      %v332 = vld [vmem:[%s1 + $0x70] sm:$0xf]
      %v333 = vld [vmem:[%s1 + $0x74] sm:$0xf]
      %v334 = vld [vmem:[%s1 + $0x78] sm:$0xf]
      %v335 = vld [vmem:[%s1 + $0x7c] sm:$0xf]
      %v336 = vld [vmem:[%s1 + $0x80] sm:$0xf]
      %v337 = vld [vmem:[%s1 + $0x84] sm:$0xf]
      %v338 = vld [vmem:[%s1 + $0x88] sm:$0xf]
      %v339 = vld [vmem:[%s1 + $0x8c] sm:$0xf]
      %v340 = vld [vmem:[%s1 + $0x90] sm:$0xf]
      %v341 = vld [vmem:[%s1 + $0x94] sm:$0xf]
      %v342 = vld [vmem:[%s1 + $0x98] sm:$0xf]
      %v343 = vld [vmem:[%s1 + $0x9c] sm:$0xf]
      %v344 = vld [vmem:[%s1 + $0xa0] sm:$0xf]
      %v345 = vld [vmem:[%s1 + $0xa4] sm:$0xf]
      %v346 = vld [vmem:[%s1 + $0xa8] sm:$0xf]
      %v347 = vld [vmem:[%s1 + $0xac] sm:$0xf]
      %v348 = vld [vmem:[%s1 + $0xb0] sm:$0xf]
      %v349 = vld [vmem:[%s1 + $0xb4] sm:$0xf]
      %v350 = vld [vmem:[%s1 + $0xb8] sm:$0xf]
      %v351 = vld [vmem:[%s1 + $0xbc] sm:$0xf]
      %v352 = vld [vmem:[%s1 + $0xc0] sm:$0xf]
      %v353 = vld [vmem:[%s1 + $0xc4] sm:$0xf]
      %v354 = vld [vmem:[%s1 + $0xc8] sm:$0xf]
      %v355 = vld [vmem:[%s1 + $0xcc] sm:$0xf]
      %v356 = vld [vmem:[%s1 + $0xd0] sm:$0xf]
      %v357 = vld [vmem:[%s1 + $0xd4] sm:$0xf]
      %v358 = vld [vmem:[%s1 + $0xd8] sm:$0xf]
      %v359 = vld [vmem:[%s1 + $0xdc] sm:$0xf]
      %v360 = vld [vmem:[%s1 + $0xe0] sm:$0xf]
      %v361 = vld [vmem:[%s1 + $0xe4] sm:$0xf]
      %v362 = vld [vmem:[%s1 + $0xe8] sm:$0xf]
      %v363 = vld [vmem:[%s1 + $0xec] sm:$0xf]
      %v364 = vld [vmem:[%s1 + $0xf0] sm:$0xf]
      %v365 = vld [vmem:[%s1 + $0xf4] sm:$0xf]
      %v366 = vld [vmem:[%s1 + $0xf8] sm:$0xf]
      %v367 = vld [vmem:[%s1 + $0xfc] sm:$0xf]
      %v368 = vld [vmem:[%s1 + $0x100] sm:$0xf]
      %v369 = vld [vmem:[%s1 + $0x104] sm:$0xf]
      %v370 = vld [vmem:[%s1 + $0x108] sm:$0xf]
      %v371 = vld [vmem:[%s1 + $0x10c] sm:$0xf]
      %v372 = vld [vmem:[%s1 + $0x110] sm:$0xf]
      %v373 = vld [vmem:[%s1 + $0x114] sm:$0xf]
      %v374 = vld [vmem:[%s1 + $0x118] sm:$0xf]
      %v375 = vld [vmem:[%s1 + $0x11c] sm:$0xf]
      %v376 = vld [vmem:[%s1 + $0x120] sm:$0xf]
      %v377 = vld [vmem:[%s1 + $0x124] sm:$0xf]
      %v378 = vld [vmem:[%s1 + $0x128] sm:$0xf]
      %v379 = vld [vmem:[%s1 + $0x12c] sm:$0xf]
      %v380 = vld [vmem:[%s1 + $0x130] sm:$0xf]
      %v381 = vld [vmem:[%s1 + $0x134] sm:$0xf]
      %v382 = vld [vmem:[%s1 + $0x138] sm:$0xf]
      %v383 = vld [vmem:[%s1 + $0x13c] sm:$0xf]
      %v384 = vld [vmem:[%s1 + $0x140] sm:$0xf]
      %v385 = vld [vmem:[%s1 + $0x144] sm:$0xf]
      %v386 = vld [vmem:[%s1 + $0x148] sm:$0xf]
      %v387 = vld [vmem:[%s1 + $0x14c] sm:$0xf]
      %v388 = vld [vmem:[%s1 + $0x150] sm:$0xf]
      %v389 = vld [vmem:[%s1 + $0x154] sm:$0xf]
      %v390 = vld [vmem:[%s1 + $0x158] sm:$0xf]
      %v391 = vld [vmem:[%s1 + $0x15c] sm:$0xf]
      %v392 = vld [vmem:[%s1 + $0x160] sm:$0xf]
      %v393 = vld [vmem:[%s1 + $0x164] sm:$0xf]
      %v394 = vld [vmem:[%s1 + $0x168] sm:$0xf]
      %v395 = vld [vmem:[%s1 + $0x16c] sm:$0xf]
      %v396 = vld [vmem:[%s1 + $0x170] sm:$0xf]
      %v397 = vld [vmem:[%s1 + $0x174] sm:$0xf]
      %v398 = vld [vmem:[%s1 + $0x178] sm:$0xf]
      %v399 = vld [vmem:[%s1 + $0x17c] sm:$0xf]
      %v496 = vunpack.c.l.b16 %v304
      %v497 = vunpack.c.l.b16 %v305
      %v498 = vunpack.c.l.b16 %v306
      %v499 = vunpack.c.l.b16 %v307
      %v500 = vunpack.c.l.b16 %v308
      %v501 = vunpack.c.l.b16 %v309
      %v502 = vunpack.c.l.b16 %v310
      %v503 = vunpack.c.l.b16 %v311
      %v504 = vunpack.c.l.b16 %v312
      %v505 = vunpack.c.l.b16 %v313
      %v506 = vunpack.c.l.b16 %v314
      %v507 = vunpack.c.l.b16 %v315
      %v508 = vunpack.c.l.b16 %v316
      %v509 = vunpack.c.l.b16 %v317
      %v510 = vunpack.c.l.b16 %v318
      %v511 = vunpack.c.l.b16 %v319
      %v512 = vunpack.c.l.b16 %v320
      %v513 = vunpack.c.l.b16 %v321
      %v514 = vunpack.c.l.b16 %v322
      %v515 = vunpack.c.l.b16 %v323
      %v516 = vunpack.c.l.b16 %v324
      %v517 = vunpack.c.l.b16 %v325
      %v518 = vunpack.c.l.b16 %v326
      %v519 = vunpack.c.l.b16 %v327
      %v520 = vunpack.c.l.b16 %v328
      %v521 = vunpack.c.l.b16 %v329
      %v522 = vunpack.c.l.b16 %v330
      %v523 = vunpack.c.l.b16 %v331
      %v524 = vunpack.c.l.b16 %v332
      %v525 = vunpack.c.l.b16 %v333
      %v526 = vunpack.c.l.b16 %v334
      %v527 = vunpack.c.l.b16 %v335
      %v528 = vunpack.c.l.b16 %v336
      %v529 = vunpack.c.l.b16 %v337
      %v530 = vunpack.c.l.b16 %v338
      %v531 = vunpack.c.l.b16 %v339
      %v532 = vunpack.c.l.b16 %v340
      %v533 = vunpack.c.l.b16 %v341
      %v534 = vunpack.c.l.b16 %v342
      %v535 = vunpack.c.l.b16 %v343
      %v536 = vunpack.c.l.b16 %v344
      %v537 = vunpack.c.l.b16 %v345
      %v538 = vunpack.c.l.b16 %v346
      %v539 = vunpack.c.l.b16 %v347
      %v540 = vunpack.c.l.b16 %v348
      %v541 = vunpack.c.l.b16 %v349
      %v542 = vunpack.c.l.b16 %v350
      %v543 = vunpack.c.l.b16 %v351
      %v544 = vunpack.c.l.b16 %v352
      %v545 = vunpack.c.l.b16 %v353
      %v546 = vunpack.c.l.b16 %v354
      %v547 = vunpack.c.l.b16 %v355
      %v548 = vunpack.c.l.b16 %v356
      %v549 = vunpack.c.l.b16 %v357
      %v550 = vunpack.c.l.b16 %v358
      %v551 = vunpack.c.l.b16 %v359
      %v552 = vunpack.c.l.b16 %v360
      %v553 = vunpack.c.l.b16 %v361
      %v554 = vunpack.c.l.b16 %v362
      %v555 = vunpack.c.l.b16 %v363
      %v556 = vunpack.c.l.b16 %v364
      %v557 = vunpack.c.l.b16 %v365
      %v558 = vunpack.c.l.b16 %v366
      %v559 = vunpack.c.l.b16 %v367
      %v560 = vunpack.c.l.b16 %v368
      %v561 = vunpack.c.l.b16 %v369
      %v562 = vunpack.c.l.b16 %v370
      %v563 = vunpack.c.l.b16 %v371
      %v564 = vunpack.c.l.b16 %v372
      %v565 = vunpack.c.l.b16 %v373
      %v566 = vunpack.c.l.b16 %v374
      %v567 = vunpack.c.l.b16 %v375
      %v568 = vunpack.c.l.b16 %v376
      %v569 = vunpack.c.l.b16 %v377
      %v570 = vunpack.c.l.b16 %v378
      %v571 = vunpack.c.l.b16 %v379
      %v572 = vunpack.c.l.b16 %v380
      %v573 = vunpack.c.l.b16 %v381
      %v574 = vunpack.c.l.b16 %v382
      %v575 = vunpack.c.l.b16 %v383
      %v576 = vunpack.c.l.b16 %v384
      %v577 = vunpack.c.l.b16 %v385
      %v578 = vunpack.c.l.b16 %v386
      %v579 = vunpack.c.l.b16 %v387
      %v580 = vunpack.c.l.b16 %v388
      %v581 = vunpack.c.l.b16 %v389
      %v582 = vunpack.c.l.b16 %v390
      %v583 = vunpack.c.l.b16 %v391
      %v584 = vunpack.c.l.b16 %v392
      %v585 = vunpack.c.l.b16 %v393
      %v586 = vunpack.c.l.b16 %v394
      %v587 = vunpack.c.l.b16 %v395
      %v588 = vunpack.c.l.b16 %v396
      %v589 = vunpack.c.l.b16 %v397
      %v590 = vunpack.c.l.b16 %v398
      %v591 = vunpack.c.l.b16 %v399
      %v592 = vpack.c.b16 %v497, %v496
      %v593 = vpack.c.b16 %v499, %v498
      %v594 = vpack.c.b16 %v501, %v500
      %v595 = vpack.c.b16 %v503, %v502
      %v596 = vpack.c.b16 %v505, %v504
      %v597 = vpack.c.b16 %v507, %v506
      %v598 = vpack.c.b16 %v509, %v508
      %v599 = vpack.c.b16 %v511, %v510
      %v600 = vpack.c.b16 %v513, %v512
      %v601 = vpack.c.b16 %v515, %v514
      %v602 = vpack.c.b16 %v517, %v516
      %v603 = vpack.c.b16 %v519, %v518
      %v604 = vpack.c.b16 %v521, %v520
      %v605 = vpack.c.b16 %v523, %v522
      %v606 = vpack.c.b16 %v525, %v524
      %v607 = vpack.c.b16 %v527, %v526
      %v608 = vpack.c.b16 %v529, %v528
      %v609 = vpack.c.b16 %v531, %v530
      %v610 = vpack.c.b16 %v533, %v532
      %v611 = vpack.c.b16 %v535, %v534
      %v612 = vpack.c.b16 %v537, %v536
      %v613 = vpack.c.b16 %v539, %v538
      %v614 = vpack.c.b16 %v541, %v540
      %v615 = vpack.c.b16 %v543, %v542
      %v616 = vpack.c.b16 %v545, %v544
      %v617 = vpack.c.b16 %v547, %v546
      %v618 = vpack.c.b16 %v549, %v548
      %v619 = vpack.c.b16 %v551, %v550
      %v620 = vpack.c.b16 %v553, %v552
      %v621 = vpack.c.b16 %v555, %v554
      %v622 = vpack.c.b16 %v557, %v556
      %v623 = vpack.c.b16 %v559, %v558
      %v624 = vpack.c.b16 %v561, %v560
      %v625 = vpack.c.b16 %v563, %v562
      %v626 = vpack.c.b16 %v565, %v564
      %v627 = vpack.c.b16 %v567, %v566
      %v628 = vpack.c.b16 %v569, %v568
      %v629 = vpack.c.b16 %v571, %v570
      %v630 = vpack.c.b16 %v573, %v572
      %v631 = vpack.c.b16 %v575, %v574
      %v632 = vpack.c.b16 %v577, %v576
      %v633 = vpack.c.b16 %v579, %v578
      %v634 = vpack.c.b16 %v581, %v580
      %v635 = vpack.c.b16 %v583, %v582
      %v636 = vpack.c.b16 %v585, %v584
      %v637 = vpack.c.b16 %v587, %v586
      %v638 = vpack.c.b16 %v589, %v588
      %v639 = vpack.c.b16 %v591, %v590
      %688 = vmatprep.subr.bf16.mxu0 0
      %689 = vmatpush1.bf16.msra.mxu0 %v592
      %690 = vmatprep.subr.bf16.mxu0 0
      %691 = vmatpush1.bf16.msra.mxu0 %v593
      %692 = vmatprep.subr.bf16.mxu0 0
      %693 = vmatpush1.bf16.msra.mxu0 %v594
      %694 = vmatprep.subr.bf16.mxu0 0
      %695 = vmatpush1.bf16.msra.mxu0 %v595
      %696 = vmatprep.subr.bf16.mxu0 0
      %697 = vmatpush1.bf16.msra.mxu0 %v596
      %698 = vmatprep.subr.bf16.mxu0 0
      %699 = vmatpush1.bf16.msra.mxu0 %v597
      %700 = vmatprep.subr.bf16.mxu0 0
      %701 = vmatpush1.bf16.msra.mxu0 %v598
      %702 = vmatprep.subr.bf16.mxu0 0
      %703 = vmatpush1.bf16.msra.mxu0 %v599
      %704 = vmatprep.subr.bf16.mxu0 0
      %705 = vmatpush1.bf16.msra.mxu0 %v600
      %706 = vmatprep.subr.bf16.mxu0 0
      %707 = vmatpush1.bf16.msra.mxu0 %v601
      %708 = vmatprep.subr.bf16.mxu0 0
      %709 = vmatpush1.bf16.msra.mxu0 %v602
      %710 = vmatprep.subr.bf16.mxu0 0
      %711 = vmatpush1.bf16.msra.mxu0 %v603
      %712 = vmatprep.subr.bf16.mxu0 0
      %713 = vmatpush1.bf16.msra.mxu0 %v604
      %714 = vmatprep.subr.bf16.mxu0 0
      %715 = vmatpush1.bf16.msra.mxu0 %v605
      %716 = vmatprep.subr.bf16.mxu0 0
      %717 = vmatpush1.bf16.msra.mxu0 %v606
      %718 = vmatprep.subr.bf16.mxu0 0
      %719 = vmatpush1.bf16.msra.mxu0 %v607
      %720 = vmatprep.mubr.bf16.mxu0 %v257
      %721 = vmatmul.mubr.bf16.gmra.mrb[0].mxu0 %v256
      %v722 = vpop.f32.mrb[0].mxu0
      %v723 = vadd.f32 0.0, %v722
      %v724 = vpop.f32.mrb[0].mxu0
      %v725 = vpop.f32.mrb[0].mxu0
      %v726 = vadd.f32 0.0, %v725
      %v727 = vpop.f32.mrb[0].mxu0
      %728 = vmatprep.mubr.bf16.mxu0 %v263
      %729 = vmatmul.mubr.bf16.gmra.mrb[0].mxu0 %v262
      %v730 = vpop.f32.mrb[0].mxu0
      %v731 = vadd.f32 0.0, %v730
      %v732 = vpop.f32.mrb[0].mxu0
      %v733 = vpop.f32.mrb[0].mxu0
      %v734 = vadd.f32 0.0, %v733
      %v735 = vpop.f32.mrb[0].mxu0
      %736 = vmatprep.mubr.bf16.mxu0 %v269
      %737 = vmatmul.mubr.bf16.gmra.mrb[0].mxu0 %v268
      %v738 = vpop.f32.mrb[0].mxu0
      %v739 = vadd.f32 0.0, %v738
      %v740 = vpop.f32.mrb[0].mxu0
      %v741 = vpop.f32.mrb[0].mxu0
      %v742 = vadd.f32 0.0, %v741
      %v743 = vpop.f32.mrb[0].mxu0
      %744 = vmatprep.mubr.bf16.mxu0 %v275
      %745 = vmatmul.mubr.bf16.gmra.mrb[0].mxu0 %v274
      %v746 = vpop.f32.mrb[0].mxu0
      %v747 = vadd.f32 0.0, %v746
      %v748 = vpop.f32.mrb[0].mxu0
      %v749 = vpop.f32.mrb[0].mxu0
      %v750 = vadd.f32 0.0, %v749
      %v751 = vpop.f32.mrb[0].mxu0
      %752 = vmatprep.mubr.bf16.mxu0 %v281
      %753 = vmatmul.mubr.bf16.gmra.mrb[0].mxu0 %v280
      %v754 = vpop.f32.mrb[0].mxu0
      %v755 = vadd.f32 0.0, %v754
      %v756 = vpop.f32.mrb[0].mxu0
      %v757 = vpop.f32.mrb[0].mxu0
      %v758 = vadd.f32 0.0, %v757
      %v759 = vpop.f32.mrb[0].mxu0
      %760 = vmatprep.mubr.bf16.mxu0 %v287
      %761 = vmatmul.mubr.bf16.gmra.mrb[0].mxu0 %v286
      %v762 = vpop.f32.mrb[0].mxu0
      %v763 = vadd.f32 0.0, %v762
      %v764 = vpop.f32.mrb[0].mxu0
      %v765 = vpop.f32.mrb[0].mxu0
      %v766 = vadd.f32 0.0, %v765
      %v767 = vpop.f32.mrb[0].mxu0
      %768 = vmatprep.mubr.bf16.mxu0 %v293
      %769 = vmatmul.mubr.bf16.gmra.mrb[0].mxu0 %v292
      %v770 = vpop.f32.mrb[0].mxu0
      %v771 = vadd.f32 0.0, %v770
      %v772 = vpop.f32.mrb[0].mxu0
      %v773 = vpop.f32.mrb[0].mxu0
      %v774 = vadd.f32 0.0, %v773
      %v775 = vpop.f32.mrb[0].mxu0
      %776 = vmatprep.mubr.bf16.mxu0 %v299
      %777 = vmatmul.mubr.bf16.gmra.mrb[0].mxu0 %v298
      %v778 = vpop.f32.mrb[0].mxu0
      %v779 = vadd.f32 0.0, %v778
      %v780 = vpop.f32.mrb[0].mxu0
      %v781 = vpop.f32.mrb[0].mxu0
      %v782 = vadd.f32 0.0, %v781
      %v783 = vpop.f32.mrb[0].mxu0
      %784 = vdwg.mxu0
      %785 = vmatprep.subr.bf16.mxu0 0
      %786 = vmatpush1.bf16.msra.mxu0 %v608
      %787 = vmatprep.subr.bf16.mxu0 0
      %788 = vmatpush1.bf16.msra.mxu0 %v609
      %789 = vmatprep.subr.bf16.mxu0 0
      %790 = vmatpush1.bf16.msra.mxu0 %v610
      %791 = vmatprep.subr.bf16.mxu0 0
      %792 = vmatpush1.bf16.msra.mxu0 %v611
      %793 = vmatprep.subr.bf16.mxu0 0
      %794 = vmatpush1.bf16.msra.mxu0 %v612
      %795 = vmatprep.subr.bf16.mxu0 0
      %796 = vmatpush1.bf16.msra.mxu0 %v613
      %797 = vmatprep.subr.bf16.mxu0 0
      %798 = vmatpush1.bf16.msra.mxu0 %v614
      %799 = vmatprep.subr.bf16.mxu0 0
      %800 = vmatpush1.bf16.msra.mxu0 %v615
      %801 = vmatprep.subr.bf16.mxu0 0
      %802 = vmatpush1.bf16.msra.mxu0 %v616
      %803 = vmatprep.subr.bf16.mxu0 0
      %804 = vmatpush1.bf16.msra.mxu0 %v617
      %805 = vmatprep.subr.bf16.mxu0 0
      %806 = vmatpush1.bf16.msra.mxu0 %v618
      %807 = vmatprep.subr.bf16.mxu0 0
      %808 = vmatpush1.bf16.msra.mxu0 %v619
      %809 = vmatprep.subr.bf16.mxu0 0
      %810 = vmatpush1.bf16.msra.mxu0 %v620
      %811 = vmatprep.subr.bf16.mxu0 0
      %812 = vmatpush1.bf16.msra.mxu0 %v621
      %813 = vmatprep.subr.bf16.mxu0 0
      %814 = vmatpush1.bf16.msra.mxu0 %v622
      %815 = vmatprep.subr.bf16.mxu0 0
      %816 = vmatpush1.bf16.msra.mxu0 %v623
      %817 = vmatprep.mubr.bf16.mxu0 %v259
      %818 = vmatmul.mubr.bf16.gmra.mrb[0].mxu0 %v258
      %v819 = vpop.f32.mrb[0].mxu0
      %v820 = vadd.f32 %v723, %v819
      %v821 = vpop.f32.mrb[0].mxu0
      %v822 = vpop.f32.mrb[0].mxu0
      %v823 = vadd.f32 %v726, %v822
      %v824 = vpop.f32.mrb[0].mxu0
      %825 = vmatprep.mubr.bf16.mxu0 %v265
      %826 = vmatmul.mubr.bf16.gmra.mrb[0].mxu0 %v264
      %v827 = vpop.f32.mrb[0].mxu0
      %v828 = vadd.f32 %v731, %v827
      %v829 = vpop.f32.mrb[0].mxu0
      %v830 = vpop.f32.mrb[0].mxu0
      %v831 = vadd.f32 %v734, %v830
      %v832 = vpop.f32.mrb[0].mxu0
      %833 = vmatprep.mubr.bf16.mxu0 %v271
      %834 = vmatmul.mubr.bf16.gmra.mrb[0].mxu0 %v270
      %v835 = vpop.f32.mrb[0].mxu0
      %v836 = vadd.f32 %v739, %v835
      %v837 = vpop.f32.mrb[0].mxu0
      %v838 = vpop.f32.mrb[0].mxu0
      %v839 = vadd.f32 %v742, %v838
      %v840 = vpop.f32.mrb[0].mxu0
      %841 = vmatprep.mubr.bf16.mxu0 %v277
      %842 = vmatmul.mubr.bf16.gmra.mrb[0].mxu0 %v276
      %v843 = vpop.f32.mrb[0].mxu0
      %v844 = vadd.f32 %v747, %v843
      %v845 = vpop.f32.mrb[0].mxu0
      %v846 = vpop.f32.mrb[0].mxu0
      %v847 = vadd.f32 %v750, %v846
      %v848 = vpop.f32.mrb[0].mxu0
      %849 = vmatprep.mubr.bf16.mxu0 %v283
      %850 = vmatmul.mubr.bf16.gmra.mrb[0].mxu0 %v282
      %v851 = vpop.f32.mrb[0].mxu0
      %v852 = vadd.f32 %v755, %v851
      %v853 = vpop.f32.mrb[0].mxu0
      %v854 = vpop.f32.mrb[0].mxu0
      %v855 = vadd.f32 %v758, %v854
      %v856 = vpop.f32.mrb[0].mxu0
      %857 = vmatprep.mubr.bf16.mxu0 %v289
      %858 = vmatmul.mubr.bf16.gmra.mrb[0].mxu0 %v288
      %v859 = vpop.f32.mrb[0].mxu0
      %v860 = vadd.f32 %v763, %v859
      %v861 = vpop.f32.mrb[0].mxu0
      %v862 = vpop.f32.mrb[0].mxu0
      %v863 = vadd.f32 %v766, %v862
      %v864 = vpop.f32.mrb[0].mxu0
      %865 = vmatprep.mubr.bf16.mxu0 %v295
      %866 = vmatmul.mubr.bf16.gmra.mrb[0].mxu0 %v294
      %v867 = vpop.f32.mrb[0].mxu0
      %v868 = vadd.f32 %v771, %v867
      %v869 = vpop.f32.mrb[0].mxu0
      %v870 = vpop.f32.mrb[0].mxu0
      %v871 = vadd.f32 %v774, %v870
      %v872 = vpop.f32.mrb[0].mxu0
      %873 = vmatprep.mubr.bf16.mxu0 %v301
      %874 = vmatmul.mubr.bf16.gmra.mrb[0].mxu0 %v300
      %v875 = vpop.f32.mrb[0].mxu0
      %v876 = vadd.f32 %v779, %v875
      %v877 = vpop.f32.mrb[0].mxu0
      %v878 = vpop.f32.mrb[0].mxu0
      %v879 = vadd.f32 %v782, %v878
      %v880 = vpop.f32.mrb[0].mxu0
      %881 = vdwg.mxu0
      %882 = vmatprep.subr.bf16.mxu0 0
      %883 = vmatpush1.bf16.msra.mxu0 %v624
      %884 = vmatprep.subr.bf16.mxu0 0
      %885 = vmatpush1.bf16.msra.mxu0 %v625
      %886 = vmatprep.subr.bf16.mxu0 0
      %887 = vmatpush1.bf16.msra.mxu0 %v626
      %888 = vmatprep.subr.bf16.mxu0 0
      %889 = vmatpush1.bf16.msra.mxu0 %v627
      %890 = vmatprep.subr.bf16.mxu0 0
      %891 = vmatpush1.bf16.msra.mxu0 %v628
      %892 = vmatprep.subr.bf16.mxu0 0
      %893 = vmatpush1.bf16.msra.mxu0 %v629
      %894 = vmatprep.subr.bf16.mxu0 0
      %895 = vmatpush1.bf16.msra.mxu0 %v630
      %896 = vmatprep.subr.bf16.mxu0 0
      %897 = vmatpush1.bf16.msra.mxu0 %v631
      %898 = vmatprep.subr.bf16.mxu0 0
      %899 = vmatpush1.bf16.msra.mxu0 %v632
      %900 = vmatprep.subr.bf16.mxu0 0
      %901 = vmatpush1.bf16.msra.mxu0 %v633
      %902 = vmatprep.subr.bf16.mxu0 0
      %903 = vmatpush1.bf16.msra.mxu0 %v634
      %904 = vmatprep.subr.bf16.mxu0 0
      %905 = vmatpush1.bf16.msra.mxu0 %v635
      %906 = vmatprep.subr.bf16.mxu0 0
      %907 = vmatpush1.bf16.msra.mxu0 %v636
      %908 = vmatprep.subr.bf16.mxu0 0
      %909 = vmatpush1.bf16.msra.mxu0 %v637
      %910 = vmatprep.subr.bf16.mxu0 0
      %911 = vmatpush1.bf16.msra.mxu0 %v638
      %912 = vmatprep.subr.bf16.mxu0 0
      %913 = vmatpush1.bf16.msra.mxu0 %v639
      %914 = vmatprep.mubr.bf16.mxu0 %v261
      %915 = vmatmul.mubr.bf16.gmra.mrb[0].mxu0 %v260
      %v916 = vpop.f32.mrb[0].mxu0
      %v917 = vadd.f32 %v820, %v916
      %v918 = vpop.f32.mrb[0].mxu0
      %v919 = vpop.f32.mrb[0].mxu0
      %v920 = vadd.f32 %v823, %v919
      %v921 = vpop.f32.mrb[0].mxu0
      %922 = vmatprep.mubr.bf16.mxu0 %v267
      %923 = vmatmul.mubr.bf16.gmra.mrb[0].mxu0 %v266
      %v924 = vpop.f32.mrb[0].mxu0
      %v925 = vadd.f32 %v828, %v924
      %v926 = vpop.f32.mrb[0].mxu0
      %v927 = vpop.f32.mrb[0].mxu0
      %v928 = vadd.f32 %v831, %v927
      %v929 = vpop.f32.mrb[0].mxu0
      %930 = vmatprep.mubr.bf16.mxu0 %v273
      %931 = vmatmul.mubr.bf16.gmra.mrb[0].mxu0 %v272
      %v932 = vpop.f32.mrb[0].mxu0
      %v933 = vadd.f32 %v836, %v932
      %v934 = vpop.f32.mrb[0].mxu0
      %v935 = vpop.f32.mrb[0].mxu0
      %v936 = vadd.f32 %v839, %v935
      %v937 = vpop.f32.mrb[0].mxu0
      %938 = vmatprep.mubr.bf16.mxu0 %v279
      %939 = vmatmul.mubr.bf16.gmra.mrb[0].mxu0 %v278
      %v940 = vpop.f32.mrb[0].mxu0
      %v941 = vadd.f32 %v844, %v940
      %v942 = vpop.f32.mrb[0].mxu0
      %v943 = vpop.f32.mrb[0].mxu0
      %v944 = vadd.f32 %v847, %v943
      %v945 = vpop.f32.mrb[0].mxu0
      %946 = vmatprep.mubr.bf16.mxu0 %v285
      %947 = vmatmul.mubr.bf16.gmra.mrb[0].mxu0 %v284
      %v948 = vpop.f32.mrb[0].mxu0
      %v949 = vadd.f32 %v852, %v948
      %v950 = vpop.f32.mrb[0].mxu0
      %v951 = vpop.f32.mrb[0].mxu0
      %v952 = vadd.f32 %v855, %v951
      %v953 = vpop.f32.mrb[0].mxu0
      %954 = vmatprep.mubr.bf16.mxu0 %v291
      %955 = vmatmul.mubr.bf16.gmra.mrb[0].mxu0 %v290
      %v956 = vpop.f32.mrb[0].mxu0
      %v957 = vadd.f32 %v860, %v956
      %v958 = vpop.f32.mrb[0].mxu0
      %v959 = vpop.f32.mrb[0].mxu0
      %v960 = vadd.f32 %v863, %v959
      %v961 = vpop.f32.mrb[0].mxu0
      %962 = vmatprep.mubr.bf16.mxu0 %v297
      %963 = vmatmul.mubr.bf16.gmra.mrb[0].mxu0 %v296
      %v964 = vpop.f32.mrb[0].mxu0
      %v965 = vadd.f32 %v868, %v964
      %v966 = vpop.f32.mrb[0].mxu0
      %v967 = vpop.f32.mrb[0].mxu0
      %v968 = vadd.f32 %v871, %v967
      %v969 = vpop.f32.mrb[0].mxu0
      %970 = vmatprep.mubr.bf16.mxu0 %v303
      %971 = vmatmul.mubr.bf16.gmra.mrb[0].mxu0 %v302
      %v972 = vpop.f32.mrb[0].mxu0
      %v973 = vadd.f32 %v876, %v972
      %v974 = vpop.f32.mrb[0].mxu0
      %v975 = vpop.f32.mrb[0].mxu0
      %v976 = vadd.f32 %v879, %v975
      %v977 = vpop.f32.mrb[0].mxu0
      %978 = vdwg.mxu0
      %v979 = vld [vmem:[%s2] sm:$0x1]
      %v981 = vlaneseq
      %v982 = vshrl.u32 %v981, 7
      %v983 = vsub.s32 0, %v982
      %v984 = vrot.slane %v979, %v983
      %v986 = vadd.f32 %v917, %v984
      %v987 = vadd.f32 %v920, %v984
      %v988 = vadd.f32 %v925, %v984
      %v989 = vadd.f32 %v928, %v984
      %v990 = vadd.f32 %v933, %v984
      %v991 = vadd.f32 %v936, %v984
      %v992 = vadd.f32 %v941, %v984
      %v993 = vadd.f32 %v944, %v984
      %v994 = vadd.f32 %v949, %v984
      %v995 = vadd.f32 %v952, %v984
      %v996 = vadd.f32 %v957, %v984
      %v997 = vadd.f32 %v960, %v984
      %v998 = vadd.f32 %v965, %v984
      %v999 = vadd.f32 %v968, %v984
      %v1000 = vadd.f32 %v973, %v984
      %v1001 = vadd.f32 %v976, %v984
      %v1002 = vmax.f32 %v986, 0.0
      %v1003 = vmax.f32 %v987, 0.0
      %v1004 = vmax.f32 %v988, 0.0
      %v1005 = vmax.f32 %v989, 0.0
      %v1006 = vmax.f32 %v990, 0.0
      %v1007 = vmax.f32 %v991, 0.0
      %v1008 = vmax.f32 %v992, 0.0
      %v1009 = vmax.f32 %v993, 0.0
      %v1010 = vmax.f32 %v994, 0.0
      %v1011 = vmax.f32 %v995, 0.0
      %v1012 = vmax.f32 %v996, 0.0
      %v1013 = vmax.f32 %v997, 0.0
      %v1014 = vmax.f32 %v998, 0.0
      %v1015 = vmax.f32 %v999, 0.0
      %v1016 = vmax.f32 %v1000, 0.0
      %v1017 = vmax.f32 %v1001, 0.0
      %v1018 = vmin.f32 %v1002, 1.0
      %v1019 = vmin.f32 %v1003, 1.0
      %v1020 = vmin.f32 %v1004, 1.0
      %v1021 = vmin.f32 %v1005, 1.0
      %v1022 = vmin.f32 %v1006, 1.0
      %v1023 = vmin.f32 %v1007, 1.0
      %v1024 = vmin.f32 %v1008, 1.0
      %v1025 = vmin.f32 %v1009, 1.0
      %v1026 = vmin.f32 %v1010, 1.0
      %v1027 = vmin.f32 %v1011, 1.0
      %v1028 = vmin.f32 %v1012, 1.0
      %v1029 = vmin.f32 %v1013, 1.0
      %v1030 = vmin.f32 %v1014, 1.0
      %v1031 = vmin.f32 %v1015, 1.0
      %v1032 = vmin.f32 %v1016, 1.0
      %v1033 = vmin.f32 %v1017, 1.0
      %v1034 = vsub.f32 %v917, 1.0
      %v1035 = vsub.f32 %v920, 1.0
      %v1036 = vsub.f32 %v925, 1.0
      %v1037 = vsub.f32 %v928, 1.0
      %v1038 = vsub.f32 %v933, 1.0
      %v1039 = vsub.f32 %v936, 1.0
      %v1040 = vsub.f32 %v941, 1.0
      %v1041 = vsub.f32 %v944, 1.0
      %v1042 = vsub.f32 %v949, 1.0
      %v1043 = vsub.f32 %v952, 1.0
      %v1044 = vsub.f32 %v957, 1.0
      %v1045 = vsub.f32 %v960, 1.0
      %v1046 = vsub.f32 %v965, 1.0
      %v1047 = vsub.f32 %v968, 1.0
      %v1048 = vsub.f32 %v973, 1.0
      %v1049 = vsub.f32 %v976, 1.0
      %v1050 = vmul.f32 %v1034, 0.25
      %v1051 = vmul.f32 %v1035, 0.25
      %v1052 = vmul.f32 %v1036, 0.25
      %v1053 = vmul.f32 %v1037, 0.25
      %v1054 = vmul.f32 %v1038, 0.25
      %v1055 = vmul.f32 %v1039, 0.25
      %v1056 = vmul.f32 %v1040, 0.25
      %v1057 = vmul.f32 %v1041, 0.25
      %v1058 = vmul.f32 %v1042, 0.25
      %v1059 = vmul.f32 %v1043, 0.25
      %v1060 = vmul.f32 %v1044, 0.25
      %v1061 = vmul.f32 %v1045, 0.25
      %v1062 = vmul.f32 %v1046, 0.25
      %v1063 = vmul.f32 %v1047, 0.25
      %v1064 = vmul.f32 %v1048, 0.25
      %v1065 = vmul.f32 %v1049, 0.25
      %v1066 = vfloor.f32 %v1050
      %v1067 = vfloor.f32 %v1051
      %v1068 = vfloor.f32 %v1052
      %v1069 = vfloor.f32 %v1053
      %v1070 = vfloor.f32 %v1054
      %v1071 = vfloor.f32 %v1055
      %v1072 = vfloor.f32 %v1056
      %v1073 = vfloor.f32 %v1057
      %v1074 = vfloor.f32 %v1058
      %v1075 = vfloor.f32 %v1059
      %v1076 = vfloor.f32 %v1060
      %v1077 = vfloor.f32 %v1061
      %v1078 = vfloor.f32 %v1062
      %v1079 = vfloor.f32 %v1063
      %v1080 = vfloor.f32 %v1064
      %v1081 = vfloor.f32 %v1065
      %v1082 = vcvt.f32.s32.to.zero.pseudo %v1066
      %v1083 = vcvt.f32.s32.to.zero.pseudo %v1067
      %v1084 = vcvt.f32.s32.to.zero.pseudo %v1068
      %v1085 = vcvt.f32.s32.to.zero.pseudo %v1069
      %v1086 = vcvt.f32.s32.to.zero.pseudo %v1070
      %v1087 = vcvt.f32.s32.to.zero.pseudo %v1071
      %v1088 = vcvt.f32.s32.to.zero.pseudo %v1072
      %v1089 = vcvt.f32.s32.to.zero.pseudo %v1073
      %v1090 = vcvt.f32.s32.to.zero.pseudo %v1074
      %v1091 = vcvt.f32.s32.to.zero.pseudo %v1075
      %v1092 = vcvt.f32.s32.to.zero.pseudo %v1076
      %v1093 = vcvt.f32.s32.to.zero.pseudo %v1077
      %v1094 = vcvt.f32.s32.to.zero.pseudo %v1078
      %v1095 = vcvt.f32.s32.to.zero.pseudo %v1079
      %v1096 = vcvt.f32.s32.to.zero.pseudo %v1080
      %v1097 = vcvt.f32.s32.to.zero.pseudo %v1081
      %vm1098 = vcmp.gt.s32.totalorder %v1082, 0
      %v1099 = vsel %vm1098, %v1082, 0
      %vm1100 = vcmp.gt.s32.totalorder %v1083, 0
      %v1101 = vsel %vm1100, %v1083, 0
      %vm1102 = vcmp.gt.s32.totalorder %v1084, 0
      %v1103 = vsel %vm1102, %v1084, 0
      %vm1104 = vcmp.gt.s32.totalorder %v1085, 0
      %v1105 = vsel %vm1104, %v1085, 0
      %vm1106 = vcmp.gt.s32.totalorder %v1086, 0
      %v1107 = vsel %vm1106, %v1086, 0
      %vm1108 = vcmp.gt.s32.totalorder %v1087, 0
      %v1109 = vsel %vm1108, %v1087, 0
      %vm1110 = vcmp.gt.s32.totalorder %v1088, 0
      %v1111 = vsel %vm1110, %v1088, 0
      %vm1112 = vcmp.gt.s32.totalorder %v1089, 0
      %v1113 = vsel %vm1112, %v1089, 0
      %vm1114 = vcmp.gt.s32.totalorder %v1090, 0
      %v1115 = vsel %vm1114, %v1090, 0
      %vm1116 = vcmp.gt.s32.totalorder %v1091, 0
      %v1117 = vsel %vm1116, %v1091, 0
      %vm1118 = vcmp.gt.s32.totalorder %v1092, 0
      %v1119 = vsel %vm1118, %v1092, 0
      %vm1120 = vcmp.gt.s32.totalorder %v1093, 0
      %v1121 = vsel %vm1120, %v1093, 0
      %vm1122 = vcmp.gt.s32.totalorder %v1094, 0
      %v1123 = vsel %vm1122, %v1094, 0
      %vm1124 = vcmp.gt.s32.totalorder %v1095, 0
      %v1125 = vsel %vm1124, %v1095, 0
      %vm1126 = vcmp.gt.s32.totalorder %v1096, 0
      %v1127 = vsel %vm1126, %v1096, 0
      %vm1128 = vcmp.gt.s32.totalorder %v1097, 0
      %v1129 = vsel %vm1128, %v1097, 0
      %vm1130 = vcmp.lt.s32.totalorder %v1099, 7
      %v1131 = vsel %vm1130, %v1099, 7
      %vm1132 = vcmp.lt.s32.totalorder %v1101, 7
      %v1133 = vsel %vm1132, %v1101, 7
      %vm1134 = vcmp.lt.s32.totalorder %v1103, 7
      %v1135 = vsel %vm1134, %v1103, 7
      %vm1136 = vcmp.lt.s32.totalorder %v1105, 7
      %v1137 = vsel %vm1136, %v1105, 7
      %vm1138 = vcmp.lt.s32.totalorder %v1107, 7
      %v1139 = vsel %vm1138, %v1107, 7
      %vm1140 = vcmp.lt.s32.totalorder %v1109, 7
      %v1141 = vsel %vm1140, %v1109, 7
      %vm1142 = vcmp.lt.s32.totalorder %v1111, 7
      %v1143 = vsel %vm1142, %v1111, 7
      %vm1144 = vcmp.lt.s32.totalorder %v1113, 7
      %v1145 = vsel %vm1144, %v1113, 7
      %vm1146 = vcmp.lt.s32.totalorder %v1115, 7
      %v1147 = vsel %vm1146, %v1115, 7
      %vm1148 = vcmp.lt.s32.totalorder %v1117, 7
      %v1149 = vsel %vm1148, %v1117, 7
      %vm1150 = vcmp.lt.s32.totalorder %v1119, 7
      %v1151 = vsel %vm1150, %v1119, 7
      %vm1152 = vcmp.lt.s32.totalorder %v1121, 7
      %v1153 = vsel %vm1152, %v1121, 7
      %vm1154 = vcmp.lt.s32.totalorder %v1123, 7
      %v1155 = vsel %vm1154, %v1123, 7
      %vm1156 = vcmp.lt.s32.totalorder %v1125, 7
      %v1157 = vsel %vm1156, %v1125, 7
      %vm1158 = vcmp.lt.s32.totalorder %v1127, 7
      %v1159 = vsel %vm1158, %v1127, 7
      %vm1160 = vcmp.lt.s32.totalorder %v1129, 7
      %v1161 = vsel %vm1160, %v1129, 7
      %v1162 = vld [vmem:[%s3] sm:$0xff]
      %v1163 = vld [vmem:[%s3 + $0x8] sm:$0xff]
      %v1164 = vld [vmem:[%s3 + $0x10] sm:$0xff]
      %v1165 = vld [vmem:[%s3 + $0x18] sm:$0xff]
      %v1166 = vld [vmem:[%s4] sm:$0x1]
      %v1168 = vlaneseq
      %v1169 = vshrl.u32 %v1168, 7
      %v1170 = vsub.s32 0, %v1169
      %v1171 = vrot.slane %v1166, %v1170
      %vm1173 = vcmask 261120
      %v1175 = vsel %vm1173, %v1018, 0
      %v1178 = vsel %vm1173, %v1019, 0
      %v1181 = vsel %vm1173, %v1020, 0
      %v1184 = vsel %vm1173, %v1021, 0
      %v1187 = vsel %vm1173, %v1022, 0
      %v1190 = vsel %vm1173, %v1023, 0
      %v1193 = vsel %vm1173, %v1024, 0
      %v1196 = vsel %vm1173, %v1025, 0
      %v1199 = vsel %vm1173, %v1026, 0
      %v1202 = vsel %vm1173, %v1027, 0
      %v1205 = vsel %vm1173, %v1028, 0
      %v1208 = vsel %vm1173, %v1029, 0
      %v1211 = vsel %vm1173, %v1030, 0
      %v1214 = vsel %vm1173, %v1031, 0
      %v1217 = vsel %vm1173, %v1032, 0
      %v1220 = vsel %vm1173, %v1033, 0
      %1222 = vmatprep.subr.mxu0 0.0
      %1223 = vmatpush1.msra.mxu0 %v1162
      %1224 = vmatprep.subr.mxu0 0.0
      %1225 = vmatpush1.msra.mxu0 %v1163
      %1226 = vmatprep.subr.mxu0 0.0
      %1227 = vmatpush1.msra.mxu0 %v1164
      %1228 = vmatprep.subr.mxu0 0.0
      %1229 = vmatpush1.msra.mxu0 %v1165
      %1230 = vmatprep.subr.mxu0 0.0
      %1231 = vmatpush1.msra.mxu0 0.0
      %1232 = vmatprep.subr.mxu0 0.0
      %1233 = vmatpush1.msra.mxu0 0.0
      %1234 = vmatprep.subr.mxu0 0.0
      %1235 = vmatpush1.msra.mxu0 0.0
      %1236 = vmatprep.subr.mxu0 0.0
      %1237 = vmatpush1.msra.mxu0 0.0
      %1238 = vmatprep.subr.mxu0 0.0
      %1239 = vmatpush1.msra.mxu0 0.0
      %1240 = vmatprep.subr.mxu0 0.0
      %1241 = vmatpush1.msra.mxu0 0.0
      %1242 = vmatprep.subr.mxu0 0.0
      %1243 = vmatpush1.msra.mxu0 0.0
      %1244 = vmatprep.subr.mxu0 0.0
      %1245 = vmatpush1.msra.mxu0 0.0
      %1246 = vmatprep.subr.mxu0 0.0
      %1247 = vmatpush1.msra.mxu0 0.0
      %1248 = vmatprep.subr.mxu0 0.0
      %1249 = vmatpush1.msra.mxu0 0.0
      %1250 = vmatprep.subr.mxu0 0.0
      %1251 = vmatpush1.msra.mxu0 0.0
      %1252 = vmatprep.subr.mxu0 0.0
      %1253 = vmatpush1.msra.mxu0 0.0
      %1254 = vmatprep.subr.mxu0 0.0
      %1255 = vmatpush1.msra.mxu0 0.0
      %1256 = vmatprep.subr.mxu0 0.0
      %1257 = vmatpush1.msra.mxu0 0.0
      %1258 = vmatprep.subr.mxu0 0.0
      %1259 = vmatpush1.msra.mxu0 0.0
      %1260 = vmatprep.subr.mxu0 0.0
      %1261 = vmatpush1.msra.mxu0 0.0
      %1262 = vmatprep.subr.mxu0 0.0
      %1263 = vmatpush1.msra.mxu0 0.0
      %1264 = vmatprep.subr.mxu0 0.0
      %1265 = vmatpush1.msra.mxu0 0.0
      %1266 = vmatprep.subr.mxu0 0.0
      %1267 = vmatpush1.msra.mxu0 0.0
      %1268 = vmatprep.subr.mxu0 0.0
      %1269 = vmatpush1.msra.mxu0 0.0
      %1270 = vmatprep.subr.mxu0 0.0
      %1271 = vmatpush1.msra.mxu0 0.0
      %1272 = vmatprep.subr.mxu0 0.0
      %1273 = vmatpush1.msra.mxu0 0.0
      %1274 = vmatprep.subr.mxu0 0.0
      %1275 = vmatpush1.msra.mxu0 0.0
      %1276 = vmatprep.subr.mxu0 0.0
      %1277 = vmatpush1.msra.mxu0 0.0
      %1278 = vmatprep.subr.mxu0 0.0
      %1279 = vmatpush1.msra.mxu0 0.0
      %1280 = vmatprep.subr.mxu0 0.0
      %1281 = vmatpush1.msra.mxu0 0.0
      %1282 = vmatprep.subr.mxu0 0.0
      %1283 = vmatpush1.msra.mxu0 0.0
      %1284 = vmatprep.subr.mxu0 0.0
      %1285 = vmatpush1.msra.mxu0 0.0
      %1286 = vmatprep.mubr.f32.mxu0 0.0
      %1287 = vmatmul.mubr.f32.gmra.mrb[0].mxu0 %v1175
      %v1288 = vpop.f32.mrb[0].mxu0
      %v1289 = vadd.f32 %v1171, %v1288
      %v1290 = vpop.f32.mrb[0].mxu0
      %1291 = vmatprep.mubr.f32.mxu0 0.0
      %1292 = vmatmul.mubr.f32.gmra.mrb[0].mxu0 %v1178
      %v1293 = vpop.f32.mrb[0].mxu0
      %v1294 = vadd.f32 %v1171, %v1293
      %v1295 = vpop.f32.mrb[0].mxu0
      %1296 = vmatprep.mubr.f32.mxu0 0.0
      %1297 = vmatmul.mubr.f32.gmra.mrb[0].mxu0 %v1181
      %v1298 = vpop.f32.mrb[0].mxu0
      %v1299 = vadd.f32 %v1171, %v1298
      %v1300 = vpop.f32.mrb[0].mxu0
      %1301 = vmatprep.mubr.f32.mxu0 0.0
      %1302 = vmatmul.mubr.f32.gmra.mrb[0].mxu0 %v1184
      %v1303 = vpop.f32.mrb[0].mxu0
      %v1304 = vadd.f32 %v1171, %v1303
      %v1305 = vpop.f32.mrb[0].mxu0
      %1306 = vmatprep.mubr.f32.mxu0 0.0
      %1307 = vmatmul.mubr.f32.gmra.mrb[0].mxu0 %v1187
      %v1308 = vpop.f32.mrb[0].mxu0
      %v1309 = vadd.f32 %v1171, %v1308
      %v1310 = vpop.f32.mrb[0].mxu0
      %1311 = vmatprep.mubr.f32.mxu0 0.0
      %1312 = vmatmul.mubr.f32.gmra.mrb[0].mxu0 %v1190
      %v1313 = vpop.f32.mrb[0].mxu0
      %v1314 = vadd.f32 %v1171, %v1313
      %v1315 = vpop.f32.mrb[0].mxu0
      %1316 = vmatprep.mubr.f32.mxu0 0.0
      %1317 = vmatmul.mubr.f32.gmra.mrb[0].mxu0 %v1193
      %v1318 = vpop.f32.mrb[0].mxu0
      %v1319 = vadd.f32 %v1171, %v1318
      %v1320 = vpop.f32.mrb[0].mxu0
      %1321 = vmatprep.mubr.f32.mxu0 0.0
      %1322 = vmatmul.mubr.f32.gmra.mrb[0].mxu0 %v1196
      %v1323 = vpop.f32.mrb[0].mxu0
      %v1324 = vadd.f32 %v1171, %v1323
      %v1325 = vpop.f32.mrb[0].mxu0
      %1326 = vmatprep.mubr.f32.mxu0 0.0
      %1327 = vmatmul.mubr.f32.gmra.mrb[0].mxu0 %v1199
      %v1328 = vpop.f32.mrb[0].mxu0
      %v1329 = vadd.f32 %v1171, %v1328
      %v1330 = vpop.f32.mrb[0].mxu0
      %1331 = vmatprep.mubr.f32.mxu0 0.0
      %1332 = vmatmul.mubr.f32.gmra.mrb[0].mxu0 %v1202
      %v1333 = vpop.f32.mrb[0].mxu0
      %v1334 = vadd.f32 %v1171, %v1333
      %v1335 = vpop.f32.mrb[0].mxu0
      %1336 = vmatprep.mubr.f32.mxu0 0.0
      %1337 = vmatmul.mubr.f32.gmra.mrb[0].mxu0 %v1205
      %v1338 = vpop.f32.mrb[0].mxu0
      %v1339 = vadd.f32 %v1171, %v1338
      %v1340 = vpop.f32.mrb[0].mxu0
      %1341 = vmatprep.mubr.f32.mxu0 0.0
      %1342 = vmatmul.mubr.f32.gmra.mrb[0].mxu0 %v1208
      %v1343 = vpop.f32.mrb[0].mxu0
      %v1344 = vadd.f32 %v1171, %v1343
      %v1345 = vpop.f32.mrb[0].mxu0
      %1346 = vmatprep.mubr.f32.mxu0 0.0
      %1347 = vmatmul.mubr.f32.gmra.mrb[0].mxu0 %v1211
      %v1348 = vpop.f32.mrb[0].mxu0
      %v1349 = vadd.f32 %v1171, %v1348
      %v1350 = vpop.f32.mrb[0].mxu0
      %1351 = vmatprep.mubr.f32.mxu0 0.0
      %1352 = vmatmul.mubr.f32.gmra.mrb[0].mxu0 %v1214
      %v1353 = vpop.f32.mrb[0].mxu0
      %v1354 = vadd.f32 %v1171, %v1353
      %v1355 = vpop.f32.mrb[0].mxu0
      %1356 = vmatprep.mubr.f32.mxu0 0.0
      %1357 = vmatmul.mubr.f32.gmra.mrb[0].mxu0 %v1217
      %v1358 = vpop.f32.mrb[0].mxu0
      %v1359 = vadd.f32 %v1171, %v1358
      %v1360 = vpop.f32.mrb[0].mxu0
      %1361 = vmatprep.mubr.f32.mxu0 0.0
      %1362 = vmatmul.mubr.f32.gmra.mrb[0].mxu0 %v1220
      %v1363 = vpop.f32.mrb[0].mxu0
      %v1364 = vadd.f32 %v1171, %v1363
      %v1365 = vpop.f32.mrb[0].mxu0
      %1366 = vdwg.mxu0
      %v1367 = vlaneseq
      %v1368 = vand.u32 %v1367, 127
      %1369 = vset.pattern.permute.xlu0 33
      %1370 = vperm.xlu0 %1369, %v1131
      %v1371 = vpop.permute.xlu0 %1370
      %1372 = vset.pattern.permute.xlu0 33
      %1373 = vperm.xlu0 %1372, %v1133
      %v1374 = vpop.permute.xlu0 %1373
      %1375 = vset.pattern.permute.xlu0 33
      %1376 = vperm.xlu0 %1375, %v1135
      %v1377 = vpop.permute.xlu0 %1376
      %1378 = vset.pattern.permute.xlu0 33
      %1379 = vperm.xlu0 %1378, %v1137
      %v1380 = vpop.permute.xlu0 %1379
      %1381 = vset.pattern.permute.xlu0 33
      %1382 = vperm.xlu0 %1381, %v1139
      %v1383 = vpop.permute.xlu0 %1382
      %1384 = vset.pattern.permute.xlu0 33
      %1385 = vperm.xlu0 %1384, %v1141
      %v1386 = vpop.permute.xlu0 %1385
      %1387 = vset.pattern.permute.xlu0 33
      %1388 = vperm.xlu0 %1387, %v1143
      %v1389 = vpop.permute.xlu0 %1388
      %1390 = vset.pattern.permute.xlu0 33
      %1391 = vperm.xlu0 %1390, %v1145
      %v1392 = vpop.permute.xlu0 %1391
      %1393 = vset.pattern.permute.xlu0 33
      %1394 = vperm.xlu0 %1393, %v1147
      %v1395 = vpop.permute.xlu0 %1394
      %1396 = vset.pattern.permute.xlu0 33
      %1397 = vperm.xlu0 %1396, %v1149
      %v1398 = vpop.permute.xlu0 %1397
      %1399 = vset.pattern.permute.xlu0 33
      %1400 = vperm.xlu0 %1399, %v1151
      %v1401 = vpop.permute.xlu0 %1400
      %1402 = vset.pattern.permute.xlu0 33
      %1403 = vperm.xlu0 %1402, %v1153
      %v1404 = vpop.permute.xlu0 %1403
      %1405 = vset.pattern.permute.xlu0 33
      %1406 = vperm.xlu0 %1405, %v1155
      %v1407 = vpop.permute.xlu0 %1406
      %1408 = vset.pattern.permute.xlu0 33
      %1409 = vperm.xlu0 %1408, %v1157
      %v1410 = vpop.permute.xlu0 %1409
      %1411 = vset.pattern.permute.xlu0 33
      %1412 = vperm.xlu0 %1411, %v1159
      %v1413 = vpop.permute.xlu0 %1412
      %1414 = vset.pattern.permute.xlu0 33
      %1415 = vperm.xlu0 %1414, %v1161
      %v1416 = vpop.permute.xlu0 %1415
      %vm1417 = vcmp.eq.s32.totalorder %v1368, %v1371
      %vm1418 = vcmp.eq.s32.totalorder %v1368, %v1374
      %vm1419 = vcmp.eq.s32.totalorder %v1368, %v1377
      %vm1420 = vcmp.eq.s32.totalorder %v1368, %v1380
      %vm1421 = vcmp.eq.s32.totalorder %v1368, %v1383
      %vm1422 = vcmp.eq.s32.totalorder %v1368, %v1386
      %vm1423 = vcmp.eq.s32.totalorder %v1368, %v1389
      %vm1424 = vcmp.eq.s32.totalorder %v1368, %v1392
      %vm1425 = vcmp.eq.s32.totalorder %v1368, %v1395
      %vm1426 = vcmp.eq.s32.totalorder %v1368, %v1398
      %vm1427 = vcmp.eq.s32.totalorder %v1368, %v1401
      %vm1428 = vcmp.eq.s32.totalorder %v1368, %v1404
      %vm1429 = vcmp.eq.s32.totalorder %v1368, %v1407
      %vm1430 = vcmp.eq.s32.totalorder %v1368, %v1410
      %vm1431 = vcmp.eq.s32.totalorder %v1368, %v1413
      %vm1432 = vcmp.eq.s32.totalorder %v1368, %v1416
      %v1433 = vsel %vm1417, %v1289, 0.0
      %v1434 = vsel %vm1418, %v1294, 0.0
      %v1435 = vsel %vm1419, %v1299, 0.0
      %v1436 = vsel %vm1420, %v1304, 0.0
      %v1437 = vsel %vm1421, %v1309, 0.0
      %v1438 = vsel %vm1422, %v1314, 0.0
      %v1439 = vsel %vm1423, %v1319, 0.0
      %v1440 = vsel %vm1424, %v1324, 0.0
      %v1441 = vsel %vm1425, %v1329, 0.0
      %v1442 = vsel %vm1426, %v1334, 0.0
      %v1443 = vsel %vm1427, %v1339, 0.0
      %v1444 = vsel %vm1428, %v1344, 0.0
      %v1445 = vsel %vm1429, %v1349, 0.0
      %v1446 = vsel %vm1430, %v1354, 0.0
      %v1447 = vsel %vm1431, %v1359, 0.0
      %v1448 = vsel %vm1432, %v1364, 0.0
      %vm1449 = vcmask 64512
      %v1450 = vsel %vm1449, %v1433, 0.0
      %1451 = vadd.xlane.f32.xlu0 %v1450
      %v1452 = vpop.xlane.xlu0 %1451
      %v1453 = vsel %vm1449, %v1434, 0.0
      %1454 = vadd.xlane.f32.xlu0 %v1453
      %v1455 = vpop.xlane.xlu0 %1454
      %v1456 = vsel %vm1449, %v1435, 0.0
      %1457 = vadd.xlane.f32.xlu0 %v1456
      %v1458 = vpop.xlane.xlu0 %1457
      %v1459 = vsel %vm1449, %v1436, 0.0
      %1460 = vadd.xlane.f32.xlu0 %v1459
      %v1461 = vpop.xlane.xlu0 %1460
      %v1462 = vsel %vm1449, %v1437, 0.0
      %1463 = vadd.xlane.f32.xlu0 %v1462
      %v1464 = vpop.xlane.xlu0 %1463
      %v1465 = vsel %vm1449, %v1438, 0.0
      %1466 = vadd.xlane.f32.xlu0 %v1465
      %v1467 = vpop.xlane.xlu0 %1466
      %v1468 = vsel %vm1449, %v1439, 0.0
      %1469 = vadd.xlane.f32.xlu0 %v1468
      %v1470 = vpop.xlane.xlu0 %1469
      %v1471 = vsel %vm1449, %v1440, 0.0
      %1472 = vadd.xlane.f32.xlu0 %v1471
      %v1473 = vpop.xlane.xlu0 %1472
      %v1474 = vsel %vm1449, %v1441, 0.0
      %1475 = vadd.xlane.f32.xlu0 %v1474
      %v1476 = vpop.xlane.xlu0 %1475
      %v1477 = vsel %vm1449, %v1442, 0.0
      %1478 = vadd.xlane.f32.xlu0 %v1477
      %v1479 = vpop.xlane.xlu0 %1478
      %v1480 = vsel %vm1449, %v1443, 0.0
      %1481 = vadd.xlane.f32.xlu0 %v1480
      %v1482 = vpop.xlane.xlu0 %1481
      %v1483 = vsel %vm1449, %v1444, 0.0
      %1484 = vadd.xlane.f32.xlu0 %v1483
      %v1485 = vpop.xlane.xlu0 %1484
      %v1486 = vsel %vm1449, %v1445, 0.0
      %1487 = vadd.xlane.f32.xlu0 %v1486
      %v1488 = vpop.xlane.xlu0 %1487
      %v1489 = vsel %vm1449, %v1446, 0.0
      %1490 = vadd.xlane.f32.xlu0 %v1489
      %v1491 = vpop.xlane.xlu0 %1490
      %v1492 = vsel %vm1449, %v1447, 0.0
      %1493 = vadd.xlane.f32.xlu0 %v1492
      %v1494 = vpop.xlane.xlu0 %1493
      %v1495 = vsel %vm1449, %v1448, 0.0
      %1496 = vadd.xlane.f32.xlu0 %v1495
      %v1497 = vpop.xlane.xlu0 %1496
      %v1498 = vadd.f32 %v1452, %v917
      %v1499 = vadd.f32 %v1455, %v920
      %v1500 = vadd.f32 %v1458, %v925
      %v1501 = vadd.f32 %v1461, %v928
      %v1502 = vadd.f32 %v1464, %v933
      %v1503 = vadd.f32 %v1467, %v936
      %v1504 = vadd.f32 %v1470, %v941
      %v1505 = vadd.f32 %v1473, %v944
      %v1506 = vadd.f32 %v1476, %v949
      %v1507 = vadd.f32 %v1479, %v952
      %v1508 = vadd.f32 %v1482, %v957
      %v1509 = vadd.f32 %v1485, %v960
      %v1510 = vadd.f32 %v1488, %v965
      %v1511 = vadd.f32 %v1491, %v968
      %v1512 = vadd.f32 %v1494, %v973
      %v1513 = vadd.f32 %v1497, %v976
      %1530 = vrot.lane.b32.xlu0 %v1498, 96
      %v1531 = vpop.permute.xlu0 %1530
      %1532 = vrot.lane.b32.xlu0 %v1499, 96
      %v1533 = vpop.permute.xlu0 %1532
      %1534 = vrot.lane.b32.xlu0 %v1500, 96
      %v1535 = vpop.permute.xlu0 %1534
      %1536 = vrot.lane.b32.xlu0 %v1501, 96
      %v1537 = vpop.permute.xlu0 %1536
      %1538 = vrot.lane.b32.xlu0 %v1502, 96
      %v1539 = vpop.permute.xlu0 %1538
      %1540 = vrot.lane.b32.xlu0 %v1503, 96
      %v1541 = vpop.permute.xlu0 %1540
      %1542 = vrot.lane.b32.xlu0 %v1504, 96
      %v1543 = vpop.permute.xlu0 %1542
      %1544 = vrot.lane.b32.xlu0 %v1505, 96
      %v1545 = vpop.permute.xlu0 %1544
      %1546 = vrot.lane.b32.xlu0 %v1506, 96
      %v1547 = vpop.permute.xlu0 %1546
      %1548 = vrot.lane.b32.xlu0 %v1507, 96
      %v1549 = vpop.permute.xlu0 %1548
      %1550 = vrot.lane.b32.xlu0 %v1508, 96
      %v1551 = vpop.permute.xlu0 %1550
      %1552 = vrot.lane.b32.xlu0 %v1509, 96
      %v1553 = vpop.permute.xlu0 %1552
      %1554 = vrot.lane.b32.xlu0 %v1510, 96
      %v1555 = vpop.permute.xlu0 %1554
      %1556 = vrot.lane.b32.xlu0 %v1511, 96
      %v1557 = vpop.permute.xlu0 %1556
      %1558 = vrot.lane.b32.xlu0 %v1512, 96
      %v1559 = vpop.permute.xlu0 %1558
      %1560 = vrot.lane.b32.xlu0 %v1513, 96
      %v1561 = vpop.permute.xlu0 %1560
      %vm1578 = vcmask 7168
      %1579 = vst.msk [vmem:[%s229] sm:$0xff] %vm1578, %v1531
      %1580 = vst.msk [vmem:[%s229 + $0x8] sm:$0xff] %vm1578, %v1533
      %1581 = vst.msk [vmem:[%s229 + $0x10] sm:$0xff] %vm1578, %v1535
      %1582 = vst.msk [vmem:[%s229 + $0x18] sm:$0xff] %vm1578, %v1537
      %1583 = vst.msk [vmem:[%s229 + $0x20] sm:$0xff] %vm1578, %v1539
      %1584 = vst.msk [vmem:[%s229 + $0x28] sm:$0xff] %vm1578, %v1541
      %1585 = vst.msk [vmem:[%s229 + $0x30] sm:$0xff] %vm1578, %v1543
      %1586 = vst.msk [vmem:[%s229 + $0x38] sm:$0xff] %vm1578, %v1545
      %1587 = vst.msk [vmem:[%s229 + $0x40] sm:$0xff] %vm1578, %v1547
      %1588 = vst.msk [vmem:[%s229 + $0x48] sm:$0xff] %vm1578, %v1549
      %1589 = vst.msk [vmem:[%s229 + $0x50] sm:$0xff] %vm1578, %v1551
      %1590 = vst.msk [vmem:[%s229 + $0x58] sm:$0xff] %vm1578, %v1553
      %1591 = vst.msk [vmem:[%s229 + $0x60] sm:$0xff] %vm1578, %v1555
      %1592 = vst.msk [vmem:[%s229 + $0x68] sm:$0xff] %vm1578, %v1557
      %1593 = vst.msk [vmem:[%s229 + $0x70] sm:$0xff] %vm1578, %v1559
      %1594 = vst.msk [vmem:[%s229 + $0x78] sm:$0xff] %vm1578, %v1561
      %s1595 = smul.u32 16, %s16
      %p1596 = scmp.lt.s32.totalorder %s1595, 31
      %s1597 = scalar_select %p1596, %s1595, 31
      %s1598 = smul.addr %s1597, 8
      %s1599 = scalar_lea.vmem %s5, %s1598
      // Predicated region
      $region41: #{tpu_custom_call.1} parent=39 // pred_check
        %p1600 = pneg %p144
      $region42: #{tpu_custom_call.1} parent=39 // pred_check_branch
        %1602 = sbr.rel (%p1600) target = $region44
      $region43: #{tpu_custom_call.1} parent=39 // pred_region
        %s1603 = smul.u32 16, %s16
      $region44: #{tpu_custom_call.1} parent=39 // pred_fallthru
        _
    $region40: #{tpu_custom_call.1} parent=5 // pred_fallthru
      _
    %p1604 = scmp.le.s32.totalorder 2, %s11
    // Predicated region
    $region45: #{tpu_custom_call.1} parent=5 // pred_check
      %p1605 = pneg %p1604
    $region46: #{tpu_custom_call.1} parent=5 // pred_check_branch
      %1607 = sbr.rel (%p1605) target = $region48
    $region47: #{tpu_custom_call.1} parent=5 // pred_region
      %s1608 = ssub.s32 %s11, 2
      // Predicated region
      $region49: #{tpu_custom_call.1} parent=47 // pred_check
        %p1609 = pneg %p150
      $region50: #{tpu_custom_call.1} parent=47 // pred_check_branch
        %1611 = sbr.rel (%p1609) target = $region52
      $region51: #{tpu_custom_call.1} parent=47 // pred_region
        %s1612 = smul.u32 16, %s17
        %p1613 = scmp.lt.s32.totalorder %s1612, 31
        %s1614 = scalar_select %p1613, %s1612, 31
        %s1615 = smul.addr %s1614, 8
        %s1616 = scalar_lea.vmem %s5, %s1615
      $region52: #{tpu_custom_call.1} parent=47 // pred_fallthru
        _
    $region48: #{tpu_custom_call.1} parent=5 // pred_fallthru
      _
  $region6: #{tpu_custom_call.1} parent=0 // loop_footer
    %s15 = sadd.s32 1, %s11
  $region7: #{tpu_custom_call.1} parent=0 // loop_footer_branch
    %10 = sbr.rel target = $region3
  $region8: #{tpu_custom_call.1} parent=0 // loop_exit
    _

</llo_original>
